<compile_context>
chip_gen: v7x
topology: tpu7x:2x2x1
jax: 0.10.0
libtpu: 0.0.40
codegen_flags: <defaults>
</compile_context>

<pallas_src>
import jax
import jax.numpy as jnp
from jax.experimental import pallas as pl
from jax.experimental.pallas import tpu as pltpu

IN_FEATURES = 16384          # fc11 in_features -> input flattens to 16384 per example
H1, H2 = 128, 64             # fc11 / fc12 widths
NUM_CLASSES = 10             # TODO(synk): label_data is empty so len(classes)==0 and
                             # nn.Linear(64, 0) is degenerate; using 10 classes instead.
OUT_PAD = 128                # fc13 output zero-padded to a full lane width (unmasked store)
K_TILE = 2048                # tile of the 16384-wide fc11 contraction (keeps VMEM ~2 MiB)


# ---------------------------------------------------------------------------
# Fused MLP kernel: grid axis = fc11 reduction; epilogue runs fc12/fc13.
# ---------------------------------------------------------------------------
def _mlp_kernel(x_ref, w11_ref, b11_ref, w12_ref, b12_ref, w13_ref, b13_ref,
                o_ref, acc_ref):
    k = pl.program_id(0)

    @pl.when(k == 0)
    def _():
        acc_ref[...] = jnp.zeros_like(acc_ref)

    # fc11 partial product: (N, K_TILE) @ (K_TILE, 128) -> accumulate in VMEM.
    acc_ref[...] += jnp.dot(x_ref[...], w11_ref[...],
                            preferred_element_type=jnp.float32)

    @pl.when(k == pl.num_programs(0) - 1)
    def _():
        h1 = jnp.maximum(acc_ref[...] + b11_ref[...], 0.0)            # (N, 128)
        h2 = jnp.maximum(
            jnp.dot(h1, w12_ref[...], preferred_element_type=jnp.float32)
            + b12_ref[...], 0.0)                                       # (N, 64)
        o_ref[...] = (jnp.dot(h2, w13_ref[...],
                              preferred_element_type=jnp.float32)
                      + b13_ref[...])                                  # (N, 128)


def mlp_forward_padded(x_flat, params):
    N, K = x_flat.shape
    assert K == IN_FEATURES and K % K_TILE == 0
    return pl.pallas_call(
        _mlp_kernel,
        out_shape=jax.ShapeDtypeStruct((N, OUT_PAD), jnp.float32),
        grid=(K // K_TILE,),
        in_specs=[
            pl.BlockSpec((N, K_TILE), lambda k: (0, k)),        # x tile
            pl.BlockSpec((K_TILE, H1), lambda k: (k, 0)),       # fc11 weight tile
            pl.BlockSpec((1, H1), lambda k: (0, 0)),            # fc11 bias
            pl.BlockSpec((H1, H2), lambda k: (0, 0)),           # fc12 weight
            pl.BlockSpec((1, H2), lambda k: (0, 0)),            # fc12 bias
            pl.BlockSpec((H2, OUT_PAD), lambda k: (0, 0)),      # fc13 weight (padded)
            pl.BlockSpec((1, OUT_PAD), lambda k: (0, 0)),       # fc13 bias (padded)
        ],
        out_specs=pl.BlockSpec((N, OUT_PAD), lambda k: (0, 0)),
        scratch_shapes=[pltpu.VMEM((N, H1), jnp.float32)],
        compiler_params=pltpu.CompilerParams(
            dimension_semantics=("arbitrary",),       # grid axis is a reduction
            vmem_limit_bytes=16 * 1024 * 1024,        # actual working set ~2 MiB
        ),
    )(x_flat, params["w11"], params["b11"], params["w12"], params["b12"],
      params["w13_pad"], params["b13_pad"])


# ---------------------------------------------------------------------------
# Deterministic parameter init (PyTorch nn.Linear-style uniform), with all
# layout work (transpose to (in,out), fc13 lane padding) hoisted to init.
# ---------------------------------------------------------------------------
def init_params(key):
    def linear_init(k, fan_in, fan_out):
        kw, kb = jax.random.split(k)
        bound = 1.0 / (fan_in ** 0.5)
        w = jax.random.uniform(kw, (fan_in, fan_out), jnp.float32, -bound, bound)
        b = jax.random.uniform(kb, (fan_out,), jnp.float32, -bound, bound)
        return w, b

    k1, k2, k3 = jax.random.split(key, 3)
    w11, b11 = linear_init(k1, IN_FEATURES, H1)
    w12, b12 = linear_init(k2, H1, H2)
    w13, b13 = linear_init(k3, H2, NUM_CLASSES)
    p = {
        "w11": w11, "b11": b11.reshape(1, H1),
        "w12": w12, "b12": b12.reshape(1, H2),
        # zero-pad fc13 to 128 output lanes once, at init (unmasked final store)
        "w13_pad": jnp.zeros((H2, OUT_PAD), jnp.float32).at[:, :NUM_CLASSES].set(w13),
        "b13_pad": jnp.zeros((1, OUT_PAD), jnp.float32).at[0, :NUM_CLASSES].set(b13),
    }
    return p


@jax.jit
def model_forward(x, params):
    x_flat = x.reshape(x.shape[0], -1).astype(jnp.float32)     # flatten(start_dim=1)
    out_pad = mlp_forward_padded(x_flat, params)                # (N, 128)
    return out_pad[:, :NUM_CLASSES]                             # (N, NUM_CLASSES)


def _reference_forward(x, params):
    x_flat = x.reshape(x.shape[0], -1).astype(jnp.float32)
    h = jnp.maximum(x_flat @ params["w11"] + params["b11"], 0.0)
    h = jnp.maximum(h @ params["w12"] + params["b12"], 0.0)
    return (h @ params["w13_pad"] + params["b13_pad"])[:, :NUM_CLASSES]


if __name__ == "__main__":
    key = jax.random.PRNGKey(0)
    k_param, k_x = jax.random.split(key)
    params = init_params(k_param)
    # fc11 in_features = 16384 = 1 * 128 * 128  ->  (N, 1, 128, 128) input
    x = jax.random.normal(k_x, (2, 1, 128, 128), jnp.float32)

    out = model_forward(x, params)
    jax.block_until_ready(out)
    assert out.shape == (2, NUM_CLASSES), out.shape

    ref = _reference_forward(x, params)
    assert jnp.allclose(out, ref, rtol=2e-2, atol=2e-2), "mismatch vs jnp reference"

    print("KERNEL_OK")
</pallas_src>

<mosaic_0001>
module attributes {stable_mosaic.version = 11 : i64} {
  func.func @_mlp_kernel(%arg0: i32, %arg1: memref<2x2048xf32, #tpu.memory_space<vmem>>, %arg2: memref<2048x128xf32, #tpu.memory_space<vmem>>, %arg3: memref<1x128xf32, #tpu.memory_space<vmem>>, %arg4: memref<128x64xf32, #tpu.memory_space<vmem>>, %arg5: memref<1x64xf32, #tpu.memory_space<vmem>>, %arg6: memref<64x128xf32, #tpu.memory_space<vmem>>, %arg7: memref<1x128xf32, #tpu.memory_space<vmem>>, %arg8: memref<2x128xf32, #tpu.memory_space<vmem>>, %arg9: memref<2x128xf32, #tpu.memory_space<vmem>>) attributes {dimension_semantics = [#tpu.dimension_semantics<arbitrary>], iteration_bounds = array<i64: 8>, scalar_prefetch = 0 : i64, scratch_operands = 1 : i64, tpu.core_type = #tpu.core_type<tc>, window_params = [{transform_indices = @transform_0, window_bounds = array<i64: 2, 2048>}, {transform_indices = @transform_1, window_bounds = array<i64: 2048, 128>}, {pipeline_mode = #tpu.pipeline_mode<synchronous>, transform_indices = @transform_2, window_bounds = array<i64: 1, 128>}, {pipeline_mode = #tpu.pipeline_mode<synchronous>, transform_indices = @transform_3, window_bounds = array<i64: 128, 64>}, {pipeline_mode = #tpu.pipeline_mode<synchronous>, transform_indices = @transform_4, window_bounds = array<i64: 1, 64>}, {pipeline_mode = #tpu.pipeline_mode<synchronous>, transform_indices = @transform_5, window_bounds = array<i64: 64, 128>}, {pipeline_mode = #tpu.pipeline_mode<synchronous>, transform_indices = @transform_6, window_bounds = array<i64: 1, 128>}, {pipeline_mode = #tpu.pipeline_mode<synchronous>, transform_indices = @transform_7, window_bounds = array<i64: 2, 128>}]} {
    %c0_i32 = arith.constant 0 : i32
    %0 = arith.cmpi eq, %arg0, %c0_i32 : i32
    %1 = arith.extui %0 : i1 to i32
    %c0_i32_0 = arith.constant 0 : i32
    %2 = arith.cmpi ne, %1, %c0_i32_0 : i32
    scf.if %2 {
      %cst_9 = arith.constant 0.000000e+00 : f32
      %12 = vector.broadcast %cst_9 : f32 to vector<2x128xf32>
      %c0_10 = arith.constant 0 : index
      %c0_11 = arith.constant 0 : index
      %13 = vector.load %arg9[%c0_10, %c0_11] : memref<2x128xf32, #tpu.memory_space<vmem>>, vector<2x128xf32>
      tpu.vector_store %arg9[%c0_10, %c0_11], %12 {strides = array<i32>} : memref<2x128xf32, #tpu.memory_space<vmem>>, vector<2x128xf32>,
    } else {
    }
    %c0 = arith.constant 0 : index
    %c0_1 = arith.constant 0 : index
    %3 = vector.load %arg9[%c0, %c0_1] : memref<2x128xf32, #tpu.memory_space<vmem>>, vector<2x128xf32>
    %c0_2 = arith.constant 0 : index
    %c0_3 = arith.constant 0 : index
    %4 = vector.load %arg1[%c0_2, %c0_3] : memref<2x2048xf32, #tpu.memory_space<vmem>>, vector<2x2048xf32>
    %c0_4 = arith.constant 0 : index
    %c0_5 = arith.constant 0 : index
    %5 = vector.load %arg2[%c0_4, %c0_5] : memref<2048x128xf32, #tpu.memory_space<vmem>>, vector<2048x128xf32>
    %cst = arith.constant dense<0.000000e+00> : vector<2x128xf32>
    %6 = tpu.matmul %4, %5, %cst {dimension_numbers = #tpu.dot_dimension_numbers<[1], [0], [0], [1], [0, 0, 1, 1], [], []>} : vector<2x2048xf32>, vector<2048x128xf32>, vector<2x128xf32> -> vector<2x128xf32>
    %7 = arith.addf %3, %6 : vector<2x128xf32>
    %c0_6 = arith.constant 0 : index
    %c0_7 = arith.constant 0 : index
    %8 = vector.load %arg9[%c0_6, %c0_7] : memref<2x128xf32, #tpu.memory_space<vmem>>, vector<2x128xf32>
    tpu.vector_store %arg9[%c0_6, %c0_7], %7 {strides = array<i32>} : memref<2x128xf32, #tpu.memory_space<vmem>>, vector<2x128xf32>,
    %c7_i32 = arith.constant 7 : i32
    %9 = arith.cmpi eq, %arg0, %c7_i32 : i32
    %10 = arith.extui %9 : i1 to i32
    %c0_i32_8 = arith.constant 0 : i32
    %11 = arith.cmpi ne, %10, %c0_i32_8 : i32
    scf.if %11 {
      %c0_9 = arith.constant 0 : index
      %c0_10 = arith.constant 0 : index
      %12 = vector.load %arg9[%c0_9, %c0_10] : memref<2x128xf32, #tpu.memory_space<vmem>>, vector<2x128xf32>
      %c0_11 = arith.constant 0 : index
      %c0_12 = arith.constant 0 : index
      %13 = vector.load %arg3[%c0_11, %c0_12] : memref<1x128xf32, #tpu.memory_space<vmem>>, vector<1x128xf32>
      %14 = vector.broadcast %13 : vector<1x128xf32> to vector<2x128xf32>
      %15 = arith.addf %12, %14 : vector<2x128xf32>
      %cst_13 = arith.constant 0.000000e+00 : f32
      %16 = vector.broadcast %cst_13 : f32 to vector<2x128xf32>
      %17 = arith.maximumf %15, %16 : vector<2x128xf32>
      %c0_14 = arith.constant 0 : index
      %c0_15 = arith.constant 0 : index
      %18 = vector.load %arg4[%c0_14, %c0_15] : memref<128x64xf32, #tpu.memory_space<vmem>>, vector<128x64xf32>
      %cst_16 = arith.constant dense<0.000000e+00> : vector<2x64xf32>
      %19 = tpu.matmul %17, %18, %cst_16 {dimension_numbers = #tpu.dot_dimension_numbers<[1], [0], [0], [1], [0, 0, 1, 1], [], []>} : vector<2x128xf32>, vector<128x64xf32>, vector<2x64xf32> -> vector<2x64xf32>
      %c0_17 = arith.constant 0 : index
      %c0_18 = arith.constant 0 : index
      %20 = vector.load %arg5[%c0_17, %c0_18] : memref<1x64xf32, #tpu.memory_space<vmem>>, vector<1x64xf32>
      %21 = vector.broadcast %20 : vector<1x64xf32> to vector<2x64xf32>
      %22 = arith.addf %19, %21 : vector<2x64xf32>
      %cst_19 = arith.constant 0.000000e+00 : f32
      %23 = vector.broadcast %cst_19 : f32 to vector<2x64xf32>
      %24 = arith.maximumf %22, %23 : vector<2x64xf32>
      %c0_20 = arith.constant 0 : index
      %c0_21 = arith.constant 0 : index
      %25 = vector.load %arg6[%c0_20, %c0_21] : memref<64x128xf32, #tpu.memory_space<vmem>>, vector<64x128xf32>
      %cst_22 = arith.constant dense<0.000000e+00> : vector<2x128xf32>
      %26 = tpu.matmul %24, %25, %cst_22 {dimension_numbers = #tpu.dot_dimension_numbers<[1], [0], [0], [1], [0, 0, 1, 1], [], []>} : vector<2x64xf32>, vector<64x128xf32>, vector<2x128xf32> -> vector<2x128xf32>
      %c0_23 = arith.constant 0 : index
      %c0_24 = arith.constant 0 : index
      %27 = vector.load %arg7[%c0_23, %c0_24] : memref<1x128xf32, #tpu.memory_space<vmem>>, vector<1x128xf32>
      %28 = vector.broadcast %27 : vector<1x128xf32> to vector<2x128xf32>
      %29 = arith.addf %26, %28 : vector<2x128xf32>
      %c0_25 = arith.constant 0 : index
      %c0_26 = arith.constant 0 : index
      %30 = vector.load %arg8[%c0_25, %c0_26] : memref<2x128xf32, #tpu.memory_space<vmem>>, vector<2x128xf32>
      tpu.vector_store %arg8[%c0_25, %c0_26], %29 {strides = array<i32>} : memref<2x128xf32, #tpu.memory_space<vmem>>, vector<2x128xf32>,
    } else {
    }
    return
  }
  func.func @transform_0(%arg0: i32) -> (i32, i32) {
    %c0_i32 = arith.constant 0 : i32
    %c0_i32_0 = arith.constant 0 : i32
    return %c0_i32, %arg0 : i32, i32
  }
  func.func @transform_1(%arg0: i32) -> (i32, i32) {
    %c0_i32 = arith.constant 0 : i32
    %c0_i32_0 = arith.constant 0 : i32
    return %arg0, %c0_i32 : i32, i32
  }
  func.func @transform_2(%arg0: i32) -> (i32, i32) {
    %c0_i32 = arith.constant 0 : i32
    %c0_i32_0 = arith.constant 0 : i32
    %c0_i32_1 = arith.constant 0 : i32
    return %c0_i32, %c0_i32_0 : i32, i32
  }
  func.func @transform_3(%arg0: i32) -> (i32, i32) {
    %c0_i32 = arith.constant 0 : i32
    %c0_i32_0 = arith.constant 0 : i32
    %c0_i32_1 = arith.constant 0 : i32
    return %c0_i32, %c0_i32_0 : i32, i32
  }
  func.func @transform_4(%arg0: i32) -> (i32, i32) {
    %c0_i32 = arith.constant 0 : i32
    %c0_i32_0 = arith.constant 0 : i32
    %c0_i32_1 = arith.constant 0 : i32
    return %c0_i32, %c0_i32_0 : i32, i32
  }
  func.func @transform_5(%arg0: i32) -> (i32, i32) {
    %c0_i32 = arith.constant 0 : i32
    %c0_i32_0 = arith.constant 0 : i32
    %c0_i32_1 = arith.constant 0 : i32
    return %c0_i32, %c0_i32_0 : i32, i32
  }
  func.func @transform_6(%arg0: i32) -> (i32, i32) {
    %c0_i32 = arith.constant 0 : i32
    %c0_i32_0 = arith.constant 0 : i32
    %c0_i32_1 = arith.constant 0 : i32
    return %c0_i32, %c0_i32_0 : i32, i32
  }
  func.func @transform_7(%arg0: i32) -> (i32, i32) {
    %c0_i32 = arith.constant 0 : i32
    %c0_i32_0 = arith.constant 0 : i32
    %c0_i32_1 = arith.constant 0 : i32
    return %c0_i32, %c0_i32_0 : i32, i32
  }
}

</mosaic_0001>

<llo_original>
// kernel: model_forward.1
$region0: #{model_forward.1}
  #allocation0 [shape = 'u32[]', space=smem, size = 0x4, offset = 0x4, fixed_abs, tag = 'smem constant byte address 0x4 - core index']
  #allocation1 [shape = 'u32[144,128]{1,0:T(1,128)}', space=vmem, size = 0x12000, scoped, tag = 'internal scratch']
  #allocation2 [shape = 'f32[2,128]{1,0:T(2,128)}', space=vmem, size = 0x400, scoped, tag = 'scratch operand']
  %s0 = inlined_call_operand.vmem [shape: f32[2,16384], index: 0, kind: input, shape index: {}]
  %s1 = inlined_call_operand.hbm [shape: f32[16384,128], index: 1, kind: input, shape index: {}]
  %s2 = inlined_call_operand.hbm [shape: f32[1,128], index: 2, kind: input, shape index: {}]
  %s3 = inlined_call_operand.vmem [shape: f32[128,64], index: 3, kind: input, shape index: {}]
  %s4 = inlined_call_operand.hbm [shape: f32[1,64], index: 4, kind: input, shape index: {}]
  %s5 = inlined_call_operand.hbm [shape: f32[64,128], index: 5, kind: input, shape index: {}]
  %s6 = inlined_call_operand.hbm [shape: f32[1,128], index: 6, kind: input, shape index: {}]
  %s7 = inlined_call_operand.hbm [shape: f32[2,128], index: 7, kind: output, shape index: {}]
  %s8 = sld [smem:[#allocation0]]
  $region89: #{model_forward.1} parent=0
    _
  %s10 = ssub.s32 1, %s8
  %s11 = scalar_select 0, %s10, %s8
  $region1: #{model_forward.1} parent=0
    #allocation3 [shape = 'u8[2097152]{0}', space=vmem, size = 0x200000, scoped, tag = 'input window, operand 1']
    #allocation4 [shape = 's32[2]{0}', space=sflag, size = 0x8, scoped, tag = 'scoped memory for model_forward.1']
    #allocation5 [shape = 's32[2]{0}', space=sflag, size = 0x8, scoped, tag = 'scoped memory for model_forward.1']
    #allocation6 [shape = 'u8[512]{0}', space=vmem, size = 0x400, scoped, tag = 'input window, operand 2, single buffered']
    #allocation7 [shape = 's32[1]{0}', space=sflag, size = 0x4, scoped, tag = 'scoped memory for model_forward.1']
    #allocation8 [shape = 'u8[512]{0}', space=vmem, size = 0x400, scoped, tag = 'input window, operand 4, single buffered']
    #allocation9 [shape = 'u8[32768]{0}', space=vmem, size = 0x8000, scoped, tag = 'input window, operand 5, single buffered']
    #allocation10 [shape = 's32[1]{0}', space=sflag, size = 0x4, scoped, tag = 'scoped memory for model_forward.1']
    #allocation11 [shape = 'u8[512]{0}', space=vmem, size = 0x400, scoped, tag = 'input window, operand 6, single buffered']
    #allocation12 [shape = 'u8[1024]{0}', space=vmem, size = 0x400, scoped, tag = 'output window, operand 0, single buffered']
    %12 = vsyncpa [#allocation4], 0
    %s13 = scalar_lea.sflag [#allocation4], 1
    %14 = vsyncpa %s13, 0
    %15 = vsyncpa [#allocation7], 0
    %16 = vsyncpa [#allocation10], 0
    %17 = vsyncpa [#allocation5], 0
    loop: start=0, step=1, limit=10
    $region2: #{model_forward.1} parent=1 // loop_pre_header
      _
    $region3: #{model_forward.1} parent=1 // loop_header
      %s19 = sphi 0, %s23
      %p20 = scmp.ge.s32.totalorder %s19, 10
      %s29 = sphi 0, %s31
      %s32 = sphi 0, %s29
      %s33 = sphi 0, %s32
      %s49 = sphi 0, %s33
      %s55 = sphi 0, %s57
      %s58 = sphi 0, %s55
      %s59 = sphi 0, %s58
      %s75 = sphi 0, %s59
      %s79 = sphi 0, %s79
      %s81 = sphi 0, %s79
      %s82 = sphi 0, %s81
      %s96 = sphi 0, %s82
      %s100 = sphi 0, %s100
      %s102 = sphi 0, %s100
      %s103 = sphi 0, %s102
      %s117 = sphi 0, %s103
      %s121 = sphi 0, %s121
      %s123 = sphi 0, %s121
      %s124 = sphi 0, %s123
      %s138 = sphi 0, %s124
      %s142 = sphi 0, %s142
      %s144 = sphi 0, %s142
      %s145 = sphi 0, %s144
      %s159 = sphi 0, %s145
      %s163 = sphi 0, %s163
      %s165 = sphi 0, %s163
      %s166 = sphi 0, %s165
      %s180 = sphi 0, %s166
      %s184 = sphi 0, %s184
      %s186 = sphi 0, %s184
      %s187 = sphi 0, %s186
      %s201 = sphi 0, %s187
    $region4: #{model_forward.1} parent=1 // loop_header_branch
      %22 = sbr.rel (%p20) target = $region8
    $region5: #{model_forward.1} parent=1 // loop_body
      %s24 = ssub.s32 %s19, 1
      %s25 = ssub.s32 %s19, 2
      %s26 = sadd.s32 %s19, 1
      %s27 = ssub.s32 %s19, %s26
      %p28 = scmp.eq.s32.totalorder %s27, 0
      %s30 = sadd.s32 %s29, 1
      %s31 = scalar_select %p28, %s29, %s30
      %p34 = pneg %p28
      %p35 = scmp.eq.s32.totalorder %s19, 7
      %p36 = por %p34, %p35
      %p37 = scmp.ne.s32.totalorder %s29, %s32
      %p38 = scmp.eq.s32.totalorder %s19, 0
      %p39 = por %p37, %p38
      %p40 = scmp.ne.s32.totalorder %s29, %s32
      %p41 = scmp.eq.s32.totalorder %s24, 7
      %p42 = por %p40, %p41
      %p43 = scmp.ne.s32.totalorder %s32, %s33
      %p44 = scmp.eq.s32.totalorder %s24, 0
      %p45 = por %p43, %p44
      %p46 = scmp.ne.s32.totalorder %s32, %s33
      %p47 = scmp.eq.s32.totalorder %s25, 7
      %p48 = por %p46, %p47
      %p50 = scmp.ne.s32.totalorder %s33, %s49
      %p51 = scmp.eq.s32.totalorder %s25, 0
      %p52 = por %p50, %p51
      %s53 = ssub.s32 %s19, %s26
      %p54 = scmp.eq.s32.totalorder %s53, 0
      %s56 = sadd.s32 %s55, 1
      %s57 = scalar_select %p54, %s55, %s56
      %p60 = pneg %p54
      %p61 = scmp.eq.s32.totalorder %s19, 7
      %p62 = por %p60, %p61
      %p63 = scmp.ne.s32.totalorder %s55, %s58
      %p64 = scmp.eq.s32.totalorder %s19, 0
      %p65 = por %p63, %p64
      %p66 = scmp.ne.s32.totalorder %s55, %s58
      %p67 = scmp.eq.s32.totalorder %s24, 7
      %p68 = por %p66, %p67
      %p69 = scmp.ne.s32.totalorder %s58, %s59
      %p70 = scmp.eq.s32.totalorder %s24, 0
      %p71 = por %p69, %p70
      %p72 = scmp.ne.s32.totalorder %s58, %s59
      %p73 = scmp.eq.s32.totalorder %s25, 7
      %p74 = por %p72, %p73
      %p76 = scmp.ne.s32.totalorder %s59, %s75
      %p77 = scmp.eq.s32.totalorder %s25, 0
      %p78 = por %p76, %p77
      %s80 = sadd.s32 %s79, 1
      %p83 = scmp.eq.s32.totalorder %s19, 7
      %p84 = scmp.ne.s32.totalorder %s79, %s81
      %p85 = scmp.eq.s32.totalorder %s19, 0
      %p86 = por %p84, %p85
      %p87 = scmp.ne.s32.totalorder %s79, %s81
      %p88 = scmp.eq.s32.totalorder %s24, 7
      %p89 = por %p87, %p88
      %p90 = scmp.ne.s32.totalorder %s81, %s82
      %p91 = scmp.eq.s32.totalorder %s24, 0
      %p92 = por %p90, %p91
      %p93 = scmp.ne.s32.totalorder %s81, %s82
      %p94 = scmp.eq.s32.totalorder %s25, 7
      %p95 = por %p93, %p94
      %p97 = scmp.ne.s32.totalorder %s82, %s96
      %p98 = scmp.eq.s32.totalorder %s25, 0
      %p99 = por %p97, %p98
      %s101 = sadd.s32 %s100, 1
      %p104 = scmp.eq.s32.totalorder %s19, 7
      %p105 = scmp.ne.s32.totalorder %s100, %s102
      %p106 = scmp.eq.s32.totalorder %s19, 0
      %p107 = por %p105, %p106
      %p108 = scmp.ne.s32.totalorder %s100, %s102
      %p109 = scmp.eq.s32.totalorder %s24, 7
      %p110 = por %p108, %p109
      %p111 = scmp.ne.s32.totalorder %s102, %s103
      %p112 = scmp.eq.s32.totalorder %s24, 0
      %p113 = por %p111, %p112
      %p114 = scmp.ne.s32.totalorder %s102, %s103
      %p115 = scmp.eq.s32.totalorder %s25, 7
      %p116 = por %p114, %p115
      %p118 = scmp.ne.s32.totalorder %s103, %s117
      %p119 = scmp.eq.s32.totalorder %s25, 0
      %p120 = por %p118, %p119
      %s122 = sadd.s32 %s121, 1
      %p125 = scmp.eq.s32.totalorder %s19, 7
      %p126 = scmp.ne.s32.totalorder %s121, %s123
      %p127 = scmp.eq.s32.totalorder %s19, 0
      %p128 = por %p126, %p127
      %p129 = scmp.ne.s32.totalorder %s121, %s123
      %p130 = scmp.eq.s32.totalorder %s24, 7
      %p131 = por %p129, %p130
      %p132 = scmp.ne.s32.totalorder %s123, %s124
      %p133 = scmp.eq.s32.totalorder %s24, 0
      %p134 = por %p132, %p133
      %p135 = scmp.ne.s32.totalorder %s123, %s124
      %p136 = scmp.eq.s32.totalorder %s25, 7
      %p137 = por %p135, %p136
      %p139 = scmp.ne.s32.totalorder %s124, %s138
      %p140 = scmp.eq.s32.totalorder %s25, 0
      %p141 = por %p139, %p140
      %s143 = sadd.s32 %s142, 1
      %p146 = scmp.eq.s32.totalorder %s19, 7
      %p147 = scmp.ne.s32.totalorder %s142, %s144
      %p148 = scmp.eq.s32.totalorder %s19, 0
      %p149 = por %p147, %p148
      %p150 = scmp.ne.s32.totalorder %s142, %s144
      %p151 = scmp.eq.s32.totalorder %s24, 7
      %p152 = por %p150, %p151
      %p153 = scmp.ne.s32.totalorder %s144, %s145
      %p154 = scmp.eq.s32.totalorder %s24, 0
      %p155 = por %p153, %p154
      %p156 = scmp.ne.s32.totalorder %s144, %s145
      %p157 = scmp.eq.s32.totalorder %s25, 7
      %p158 = por %p156, %p157
      %p160 = scmp.ne.s32.totalorder %s145, %s159
      %p161 = scmp.eq.s32.totalorder %s25, 0
      %p162 = por %p160, %p161
      %s164 = sadd.s32 %s163, 1
      %p167 = scmp.eq.s32.totalorder %s19, 7
      %p168 = scmp.ne.s32.totalorder %s163, %s165
      %p169 = scmp.eq.s32.totalorder %s19, 0
      %p170 = por %p168, %p169
      %p171 = scmp.ne.s32.totalorder %s163, %s165
      %p172 = scmp.eq.s32.totalorder %s24, 7
      %p173 = por %p171, %p172
      %p174 = scmp.ne.s32.totalorder %s165, %s166
      %p175 = scmp.eq.s32.totalorder %s24, 0
      %p176 = por %p174, %p175
      %p177 = scmp.ne.s32.totalorder %s165, %s166
      %p178 = scmp.eq.s32.totalorder %s25, 7
      %p179 = por %p177, %p178
      %p181 = scmp.ne.s32.totalorder %s166, %s180
      %p182 = scmp.eq.s32.totalorder %s25, 0
      %p183 = por %p181, %p182
      %s185 = sadd.s32 %s184, 1
      %p188 = scmp.eq.s32.totalorder %s19, 7
      %p189 = scmp.ne.s32.totalorder %s184, %s186
      %p190 = scmp.eq.s32.totalorder %s19, 0
      %p191 = por %p189, %p190
      %p192 = scmp.ne.s32.totalorder %s184, %s186
      %p193 = scmp.eq.s32.totalorder %s24, 7
      %p194 = por %p192, %p193
      %p195 = scmp.ne.s32.totalorder %s186, %s187
      %p196 = scmp.eq.s32.totalorder %s24, 0
      %p197 = por %p195, %p196
      %p198 = scmp.ne.s32.totalorder %s186, %s187
      %p199 = scmp.eq.s32.totalorder %s25, 7
      %p200 = por %p198, %p199
      %p202 = scmp.ne.s32.totalorder %s187, %s201
      %p203 = scmp.eq.s32.totalorder %s25, 0
      %p204 = por %p202, %p203
      %p205 = scmp.le.s32.totalorder 1, %s19
      %p206 = scmp.lt.s32.totalorder %s19, 9
      %p207 = pnand %p205, %p206
      %p208 = pneg %p207
      // Predicated region
      $region9: #{model_forward.1} parent=5 // pred_check
        _
      $region10: #{model_forward.1} parent=5 // pred_check_branch
        %210 = sbr.rel (%p207) target = $region12
      $region11: #{model_forward.1} parent=5 // pred_region
        %s211 = ssub.s32 %s19, 1
        // Predicated region
        $region13: #{model_forward.1} parent=11 // pred_check
          %p212 = pneg %p92
        $region14: #{model_forward.1} parent=11 // pred_check_branch
          %214 = sbr.rel (%p212) target = $region16
        $region15: #{model_forward.1} parent=11 // pred_region
          %s216 = ssub.s32 16, 16
          %217 = vsyncadd [#allocation7], %s216
          %s219 = sshll.u32 [#allocation6], 4
          %s220 = int_to_ptr.vmem [resolvable:$true] %s219
          %222 = dma.hbm_to_vmem [thread:$0]  %s2, 16, %s220, [#allocation7]
        $region16: #{model_forward.1} parent=11 // pred_fallthru
          _
        // Predicated region
        $region17: #{model_forward.1} parent=11 // pred_check
          %p223 = pneg %p113
        $region18: #{model_forward.1} parent=11 // pred_check_branch
          %225 = sbr.rel (%p223) target = $region20
        $region19: #{model_forward.1} parent=11 // pred_region
          _
        $region20: #{model_forward.1} parent=11 // pred_fallthru
          _
        // Predicated region
        $region21: #{model_forward.1} parent=11 // pred_check
          %p226 = pneg %p134
        $region22: #{model_forward.1} parent=11 // pred_check_branch
          %228 = sbr.rel (%p226) target = $region24
        $region23: #{model_forward.1} parent=11 // pred_region
          %s230 = ssub.s32 16, 16
          %231 = vsyncadd [#allocation7], %s230
          %s233 = sshll.u32 [#allocation8], 4
          %s234 = int_to_ptr.vmem [resolvable:$true] %s233
          %236 = dma.hbm_to_vmem [thread:$0]  %s4, 16, %s234, [#allocation7]
        $region24: #{model_forward.1} parent=11 // pred_fallthru
          _
        // Predicated region
        $region25: #{model_forward.1} parent=11 // pred_check
          %p237 = pneg %p155
        $region26: #{model_forward.1} parent=11 // pred_check_branch
          %239 = sbr.rel (%p237) target = $region28
        $region27: #{model_forward.1} parent=11 // pred_region
          %s241 = ssub.s32 1024, 1024
          %242 = vsyncadd [#allocation10], %s241
          %s243 = sshll.u32 [#allocation9], 4
          %s244 = int_to_ptr.vmem [resolvable:$true] %s243
          %249 = dma.hbm_to_vmem [thread:$0]  %s5, 1024, %s244, [#allocation10], 128, 128, 8
        $region28: #{model_forward.1} parent=11 // pred_fallthru
          _
        // Predicated region
        $region29: #{model_forward.1} parent=11 // pred_check
          %p250 = pneg %p176
        $region30: #{model_forward.1} parent=11 // pred_check_branch
          %252 = sbr.rel (%p250) target = $region32
        $region31: #{model_forward.1} parent=11 // pred_region
          %s254 = ssub.s32 16, 16
          %255 = vsyncadd [#allocation10], %s254
          %s257 = sshll.u32 [#allocation11], 4
          %s258 = int_to_ptr.vmem [resolvable:$true] %s257
          %260 = dma.hbm_to_vmem [thread:$0]  %s6, 16, %s258, [#allocation10]
        $region32: #{model_forward.1} parent=11 // pred_fallthru
          _
      $region12: #{model_forward.1} parent=5 // pred_fallthru
        _
      %p261 = scmp.lt.s32.totalorder %s19, 8
      // Predicated region
      $region33: #{model_forward.1} parent=5 // pred_check
        %p262 = pneg %p261
      $region34: #{model_forward.1} parent=5 // pred_check_branch
        %264 = sbr.rel (%p262) target = $region36
      $region35: #{model_forward.1} parent=5 // pred_region
        // Predicated region
        $region37: #{model_forward.1} parent=35 // pred_check
          %p265 = pneg %p39
        $region38: #{model_forward.1} parent=35 // pred_check_branch
          %267 = sbr.rel (%p265) target = $region40
        $region39: #{model_forward.1} parent=35 // pred_region
          %s268 = smul.u32 16, %s19
          %p269 = scmp.lt.s32.totalorder %s268, 127
          %s270 = scalar_select %p269, %s268, 127
          %s271 = smul.addr %s270, 2
          %s272 = scalar_lea.vmem %s0, %s271
          %s273 = smul.u32 16, %s19
        $region40: #{model_forward.1} parent=35 // pred_fallthru
          _
        // Predicated region
        $region41: #{model_forward.1} parent=35 // pred_check
          %p274 = pneg %p65
        $region42: #{model_forward.1} parent=35 // pred_check_branch
          %276 = sbr.rel (%p274) target = $region44
        $region43: #{model_forward.1} parent=35 // pred_region
          %s277 = sand.u32 %s55, 1
          %s278 = scalar_lea.sflag [#allocation4], %s277
          %s279 = sand.u32 %s55, 1
          %s280 = smul.addr %s279, 2048
          %s281 = scalar_lea.vmem [#allocation3], %s280
          %s282 = smul.u32 256, %s19
          %s284 = ssub.s32 32768, 32768
          %285 = vsyncadd %s278, %s284
          %s286 = smul.addr %s282, 128
          %s287 = scalar_lea.hbm %s1, %s286
          %s288 = sshll.u32 %s281, 4
          %s289 = int_to_ptr.vmem [resolvable:$true] %s288
          %294 = dma.hbm_to_vmem [thread:$0]  %s287, 32768, %s289, %s278, 128, 128, 8
        $region44: #{model_forward.1} parent=35 // pred_fallthru
          _
      $region36: #{model_forward.1} parent=5 // pred_fallthru
        _
      %p295 = scmp.le.s32.totalorder 1, %s19
      %p296 = scmp.lt.s32.totalorder %s19, 9
      %p297 = pnand %p295, %p296
      %p298 = pneg %p297
      // Predicated region
      $region45: #{model_forward.1} parent=5 // pred_check
        _
      $region46: #{model_forward.1} parent=5 // pred_check_branch
        %300 = sbr.rel (%p297) target = $region48
      $region47: #{model_forward.1} parent=5 // pred_region
        %s301 = ssub.s32 %s19, 1
        %s302 = sand.u32 %s58, 1
        %s303 = scalar_lea.sflag [#allocation4], %s302
        %s304 = sand.u32 %s58, 1
        %s305 = smul.addr %s304, 2048
        %s306 = scalar_lea.vmem [#allocation3], %s305
        // Predicated region
        $region49: #{model_forward.1} parent=47 // pred_check
          %p307 = pneg %p71
        $region50: #{model_forward.1} parent=47 // pred_check_branch
          %309 = sbr.rel (%p307) target = $region52
        $region51: #{model_forward.1} parent=47 // pred_region
          %310 = dma.done %s303, 32768
        $region52: #{model_forward.1} parent=47 // pred_fallthru
          _
        // Predicated region
        $region53: #{model_forward.1} parent=47 // pred_check
          %p311 = pneg %p92
        $region54: #{model_forward.1} parent=47 // pred_check_branch
          %313 = sbr.rel (%p311) target = $region56
        $region55: #{model_forward.1} parent=47 // pred_region
          %314 = dma.done [#allocation7], 16
        $region56: #{model_forward.1} parent=47 // pred_fallthru
          _
        // Predicated region
        $region57: #{model_forward.1} parent=47 // pred_check
          %p315 = pneg %p134
        $region58: #{model_forward.1} parent=47 // pred_check_branch
          %317 = sbr.rel (%p315) target = $region60
        $region59: #{model_forward.1} parent=47 // pred_region
          %318 = dma.done [#allocation7], 16
        $region60: #{model_forward.1} parent=47 // pred_fallthru
          _
        // Predicated region
        $region61: #{model_forward.1} parent=47 // pred_check
          %p319 = pneg %p155
        $region62: #{model_forward.1} parent=47 // pred_check_branch
          %321 = sbr.rel (%p319) target = $region64
        $region63: #{model_forward.1} parent=47 // pred_region
          %322 = dma.done [#allocation10], 1024
        $region64: #{model_forward.1} parent=47 // pred_fallthru
          _
        // Predicated region
        $region65: #{model_forward.1} parent=47 // pred_check
          %p323 = pneg %p176
        $region66: #{model_forward.1} parent=47 // pred_check_branch
          %325 = sbr.rel (%p323) target = $region68
        $region67: #{model_forward.1} parent=47 // pred_region
          %326 = dma.done [#allocation10], 16
        $region68: #{model_forward.1} parent=47 // pred_fallthru
          _
        %s327 = smul.u32 16, %s24
        %p328 = scmp.lt.s32.totalorder %s327, 127
        %s329 = scalar_select %p328, %s327, 127
        %s330 = smul.addr %s329, 2
        %s331 = scalar_lea.vmem %s0, %s330
        %p332 = pneg %p45
        %p333 = pneg %p42
        %s334 = sand.u32 %s58, 1
        %s335 = scalar_lea.sflag [#allocation4], %s334
        %s336 = sand.u32 %s58, 1
        %s337 = smul.addr %s336, 2048
        %s338 = scalar_lea.vmem [#allocation3], %s337
        %p339 = pneg %p71
        %p340 = pneg %p68
        %p341 = pneg %p92
        %p342 = pneg %p89
        %p343 = pneg %p113
        %p344 = pneg %p110
        %p345 = pneg %p134
        %p346 = pneg %p131
        %p347 = pneg %p155
        %p348 = pneg %p152
        %p349 = pneg %p176
        %p350 = pneg %p173
        %p351 = pneg %p197
        %p352 = pneg %p194
        %s353 = smul.u32 16, %s24
        %p354 = scmp.lt.s32.totalorder %s353, 127
        %s355 = scalar_select %p354, %s353, 127
        %s356 = smul.addr %s355, 2
        %s357 = scalar_lea.vmem %s0, %s356
        %s358 = smul.u32 16, %s24
        %s359 = smul.u32 256, %s24
        %p360 = scmp.eq.s32.totalorder %s24, 0
        // Predicated region
        $region69: #{model_forward.1} parent=47 // pred_check
          %p361 = pneg %p360
        $region70: #{model_forward.1} parent=47 // pred_check_branch
          %363 = sbr.rel (%p361) target = $region72
        $region71: #{model_forward.1} parent=47 // pred_region
          %364 = vst [vmem:[#allocation2] sm:$0x3] 0.0
        $region72: #{model_forward.1} parent=47 // pred_fallthru
          _
        %v365 = vld [vmem:[#allocation2] sm:$0x3]
        %v366 = vld [vmem:[%s357] sm:$0xff]
        %v367 = vld [vmem:[%s357 + $0x8] sm:$0xff]
        %v368 = vld [vmem:[%s357 + $0x10] sm:$0xff]
        %v369 = vld [vmem:[%s357 + $0x18] sm:$0xff]
        %v370 = vld [vmem:[%s306] sm:$0xff]
        %v371 = vld [vmem:[%s306 + $0x8] sm:$0xff]
        %v372 = vld [vmem:[%s306 + $0x10] sm:$0xff]
        %v373 = vld [vmem:[%s306 + $0x18] sm:$0xff]
        %v374 = vld [vmem:[%s306 + $0x20] sm:$0xff]
        %v375 = vld [vmem:[%s306 + $0x28] sm:$0xff]
        %v376 = vld [vmem:[%s306 + $0x30] sm:$0xff]
        %v377 = vld [vmem:[%s306 + $0x38] sm:$0xff]
        %v378 = vld [vmem:[%s306 + $0x40] sm:$0xff]
        %v379 = vld [vmem:[%s306 + $0x48] sm:$0xff]
        %v380 = vld [vmem:[%s306 + $0x50] sm:$0xff]
        %v381 = vld [vmem:[%s306 + $0x58] sm:$0xff]
        %v382 = vld [vmem:[%s306 + $0x60] sm:$0xff]
        %v383 = vld [vmem:[%s306 + $0x68] sm:$0xff]
        %v384 = vld [vmem:[%s306 + $0x70] sm:$0xff]
        %v385 = vld [vmem:[%s306 + $0x78] sm:$0xff]
        %v386 = vld [vmem:[%s306 + $0x80] sm:$0xff]
        %v387 = vld [vmem:[%s306 + $0x88] sm:$0xff]
        %v388 = vld [vmem:[%s306 + $0x90] sm:$0xff]
        %v389 = vld [vmem:[%s306 + $0x98] sm:$0xff]
        %v390 = vld [vmem:[%s306 + $0xa0] sm:$0xff]
        %v391 = vld [vmem:[%s306 + $0xa8] sm:$0xff]
        %v392 = vld [vmem:[%s306 + $0xb0] sm:$0xff]
        %v393 = vld [vmem:[%s306 + $0xb8] sm:$0xff]
        %v394 = vld [vmem:[%s306 + $0xc0] sm:$0xff]
        %v395 = vld [vmem:[%s306 + $0xc8] sm:$0xff]
        %v396 = vld [vmem:[%s306 + $0xd0] sm:$0xff]
        %v397 = vld [vmem:[%s306 + $0xd8] sm:$0xff]
        %v398 = vld [vmem:[%s306 + $0xe0] sm:$0xff]
        %v399 = vld [vmem:[%s306 + $0xe8] sm:$0xff]
        %v400 = vld [vmem:[%s306 + $0xf0] sm:$0xff]
        %v401 = vld [vmem:[%s306 + $0xf8] sm:$0xff]
        %v402 = vld [vmem:[%s306 + $0x100] sm:$0xff]
        %v403 = vld [vmem:[%s306 + $0x108] sm:$0xff]
        %v404 = vld [vmem:[%s306 + $0x110] sm:$0xff]
        %v405 = vld [vmem:[%s306 + $0x118] sm:$0xff]
        %v406 = vld [vmem:[%s306 + $0x120] sm:$0xff]
        %v407 = vld [vmem:[%s306 + $0x128] sm:$0xff]
        %v408 = vld [vmem:[%s306 + $0x130] sm:$0xff]
        %v409 = vld [vmem:[%s306 + $0x138] sm:$0xff]
        %v410 = vld [vmem:[%s306 + $0x140] sm:$0xff]
        %v411 = vld [vmem:[%s306 + $0x148] sm:$0xff]
        %v412 = vld [vmem:[%s306 + $0x150] sm:$0xff]
        %v413 = vld [vmem:[%s306 + $0x158] sm:$0xff]
        %v414 = vld [vmem:[%s306 + $0x160] sm:$0xff]
        %v415 = vld [vmem:[%s306 + $0x168] sm:$0xff]
        %v416 = vld [vmem:[%s306 + $0x170] sm:$0xff]
        %v417 = vld [vmem:[%s306 + $0x178] sm:$0xff]
        %v418 = vld [vmem:[%s306 + $0x180] sm:$0xff]
        %v419 = vld [vmem:[%s306 + $0x188] sm:$0xff]
        %v420 = vld [vmem:[%s306 + $0x190] sm:$0xff]
        %v421 = vld [vmem:[%s306 + $0x198] sm:$0xff]
        %v422 = vld [vmem:[%s306 + $0x1a0] sm:$0xff]
        %v423 = vld [vmem:[%s306 + $0x1a8] sm:$0xff]
        %v424 = vld [vmem:[%s306 + $0x1b0] sm:$0xff]
        %v425 = vld [vmem:[%s306 + $0x1b8] sm:$0xff]
        %v426 = vld [vmem:[%s306 + $0x1c0] sm:$0xff]
        %v427 = vld [vmem:[%s306 + $0x1c8] sm:$0xff]
        %v428 = vld [vmem:[%s306 + $0x1d0] sm:$0xff]
        %v429 = vld [vmem:[%s306 + $0x1d8] sm:$0xff]
        %v430 = vld [vmem:[%s306 + $0x1e0] sm:$0xff]
        %v431 = vld [vmem:[%s306 + $0x1e8] sm:$0xff]
        %v432 = vld [vmem:[%s306 + $0x1f0] sm:$0xff]
        %v433 = vld [vmem:[%s306 + $0x1f8] sm:$0xff]
        %v434 = vld [vmem:[%s306 + $0x200] sm:$0xff]
        %v435 = vld [vmem:[%s306 + $0x208] sm:$0xff]
        %v436 = vld [vmem:[%s306 + $0x210] sm:$0xff]
        %v437 = vld [vmem:[%s306 + $0x218] sm:$0xff]
        %v438 = vld [vmem:[%s306 + $0x220] sm:$0xff]
        %v439 = vld [vmem:[%s306 + $0x228] sm:$0xff]
        %v440 = vld [vmem:[%s306 + $0x230] sm:$0xff]
        %v441 = vld [vmem:[%s306 + $0x238] sm:$0xff]
        %v442 = vld [vmem:[%s306 + $0x240] sm:$0xff]
        %v443 = vld [vmem:[%s306 + $0x248] sm:$0xff]
        %v444 = vld [vmem:[%s306 + $0x250] sm:$0xff]
        %v445 = vld [vmem:[%s306 + $0x258] sm:$0xff]
        %v446 = vld [vmem:[%s306 + $0x260] sm:$0xff]
        %v447 = vld [vmem:[%s306 + $0x268] sm:$0xff]
        %v448 = vld [vmem:[%s306 + $0x270] sm:$0xff]
        %v449 = vld [vmem:[%s306 + $0x278] sm:$0xff]
        %v450 = vld [vmem:[%s306 + $0x280] sm:$0xff]
        %v451 = vld [vmem:[%s306 + $0x288] sm:$0xff]
        %v452 = vld [vmem:[%s306 + $0x290] sm:$0xff]
        %v453 = vld [vmem:[%s306 + $0x298] sm:$0xff]
        %v454 = vld [vmem:[%s306 + $0x2a0] sm:$0xff]
        %v455 = vld [vmem:[%s306 + $0x2a8] sm:$0xff]
        %v456 = vld [vmem:[%s306 + $0x2b0] sm:$0xff]
        %v457 = vld [vmem:[%s306 + $0x2b8] sm:$0xff]
        %v458 = vld [vmem:[%s306 + $0x2c0] sm:$0xff]
        %v459 = vld [vmem:[%s306 + $0x2c8] sm:$0xff]
        %v460 = vld [vmem:[%s306 + $0x2d0] sm:$0xff]
        %v461 = vld [vmem:[%s306 + $0x2d8] sm:$0xff]
        %v462 = vld [vmem:[%s306 + $0x2e0] sm:$0xff]
        %v463 = vld [vmem:[%s306 + $0x2e8] sm:$0xff]
        %v464 = vld [vmem:[%s306 + $0x2f0] sm:$0xff]
        %v465 = vld [vmem:[%s306 + $0x2f8] sm:$0xff]
        %v466 = vld [vmem:[%s306 + $0x300] sm:$0xff]
        %v467 = vld [vmem:[%s306 + $0x308] sm:$0xff]
        %v468 = vld [vmem:[%s306 + $0x310] sm:$0xff]
        %v469 = vld [vmem:[%s306 + $0x318] sm:$0xff]
        %v470 = vld [vmem:[%s306 + $0x320] sm:$0xff]
        %v471 = vld [vmem:[%s306 + $0x328] sm:$0xff]
        %v472 = vld [vmem:[%s306 + $0x330] sm:$0xff]
        %v473 = vld [vmem:[%s306 + $0x338] sm:$0xff]
        %v474 = vld [vmem:[%s306 + $0x340] sm:$0xff]
        %v475 = vld [vmem:[%s306 + $0x348] sm:$0xff]
        %v476 = vld [vmem:[%s306 + $0x350] sm:$0xff]
        %v477 = vld [vmem:[%s306 + $0x358] sm:$0xff]
        %v478 = vld [vmem:[%s306 + $0x360] sm:$0xff]
        %v479 = vld [vmem:[%s306 + $0x368] sm:$0xff]
        %v480 = vld [vmem:[%s306 + $0x370] sm:$0xff]
        %v481 = vld [vmem:[%s306 + $0x378] sm:$0xff]
        %v482 = vld [vmem:[%s306 + $0x380] sm:$0xff]
        %v483 = vld [vmem:[%s306 + $0x388] sm:$0xff]
        %v484 = vld [vmem:[%s306 + $0x390] sm:$0xff]
        %v485 = vld [vmem:[%s306 + $0x398] sm:$0xff]
        %v486 = vld [vmem:[%s306 + $0x3a0] sm:$0xff]
        %v487 = vld [vmem:[%s306 + $0x3a8] sm:$0xff]
        %v488 = vld [vmem:[%s306 + $0x3b0] sm:$0xff]
        %v489 = vld [vmem:[%s306 + $0x3b8] sm:$0xff]
        %v490 = vld [vmem:[%s306 + $0x3c0] sm:$0xff]
        %v491 = vld [vmem:[%s306 + $0x3c8] sm:$0xff]
        %v492 = vld [vmem:[%s306 + $0x3d0] sm:$0xff]
        %v493 = vld [vmem:[%s306 + $0x3d8] sm:$0xff]
        %v494 = vld [vmem:[%s306 + $0x3e0] sm:$0xff]
        %v495 = vld [vmem:[%s306 + $0x3e8] sm:$0xff]
        %v496 = vld [vmem:[%s306 + $0x3f0] sm:$0xff]
        %v497 = vld [vmem:[%s306 + $0x3f8] sm:$0xff]
        %v498 = vld [vmem:[%s306 + $0x400] sm:$0xff]
        %v499 = vld [vmem:[%s306 + $0x408] sm:$0xff]
        %v500 = vld [vmem:[%s306 + $0x410] sm:$0xff]
        %v501 = vld [vmem:[%s306 + $0x418] sm:$0xff]
        %v502 = vld [vmem:[%s306 + $0x420] sm:$0xff]
        %v503 = vld [vmem:[%s306 + $0x428] sm:$0xff]
        %v504 = vld [vmem:[%s306 + $0x430] sm:$0xff]
        %v505 = vld [vmem:[%s306 + $0x438] sm:$0xff]
        %v506 = vld [vmem:[%s306 + $0x440] sm:$0xff]
        %v507 = vld [vmem:[%s306 + $0x448] sm:$0xff]
        %v508 = vld [vmem:[%s306 + $0x450] sm:$0xff]
        %v509 = vld [vmem:[%s306 + $0x458] sm:$0xff]
        %v510 = vld [vmem:[%s306 + $0x460] sm:$0xff]
        %v511 = vld [vmem:[%s306 + $0x468] sm:$0xff]
        %v512 = vld [vmem:[%s306 + $0x470] sm:$0xff]
        %v513 = vld [vmem:[%s306 + $0x478] sm:$0xff]
        %v514 = vld [vmem:[%s306 + $0x480] sm:$0xff]
        %v515 = vld [vmem:[%s306 + $0x488] sm:$0xff]
        %v516 = vld [vmem:[%s306 + $0x490] sm:$0xff]
        %v517 = vld [vmem:[%s306 + $0x498] sm:$0xff]
        %v518 = vld [vmem:[%s306 + $0x4a0] sm:$0xff]
        %v519 = vld [vmem:[%s306 + $0x4a8] sm:$0xff]
        %v520 = vld [vmem:[%s306 + $0x4b0] sm:$0xff]
        %v521 = vld [vmem:[%s306 + $0x4b8] sm:$0xff]
        %v522 = vld [vmem:[%s306 + $0x4c0] sm:$0xff]
        %v523 = vld [vmem:[%s306 + $0x4c8] sm:$0xff]
        %v524 = vld [vmem:[%s306 + $0x4d0] sm:$0xff]
        %v525 = vld [vmem:[%s306 + $0x4d8] sm:$0xff]
        %v526 = vld [vmem:[%s306 + $0x4e0] sm:$0xff]
        %v527 = vld [vmem:[%s306 + $0x4e8] sm:$0xff]
        %v528 = vld [vmem:[%s306 + $0x4f0] sm:$0xff]
        %v529 = vld [vmem:[%s306 + $0x4f8] sm:$0xff]
        %v530 = vld [vmem:[%s306 + $0x500] sm:$0xff]
        %v531 = vld [vmem:[%s306 + $0x508] sm:$0xff]
        %v532 = vld [vmem:[%s306 + $0x510] sm:$0xff]
        %v533 = vld [vmem:[%s306 + $0x518] sm:$0xff]
        %v534 = vld [vmem:[%s306 + $0x520] sm:$0xff]
        %v535 = vld [vmem:[%s306 + $0x528] sm:$0xff]
        %v536 = vld [vmem:[%s306 + $0x530] sm:$0xff]
        %v537 = vld [vmem:[%s306 + $0x538] sm:$0xff]
        %v538 = vld [vmem:[%s306 + $0x540] sm:$0xff]
        %v539 = vld [vmem:[%s306 + $0x548] sm:$0xff]
        %v540 = vld [vmem:[%s306 + $0x550] sm:$0xff]
        %v541 = vld [vmem:[%s306 + $0x558] sm:$0xff]
        %v542 = vld [vmem:[%s306 + $0x560] sm:$0xff]
        %v543 = vld [vmem:[%s306 + $0x568] sm:$0xff]
        %v544 = vld [vmem:[%s306 + $0x570] sm:$0xff]
        %v545 = vld [vmem:[%s306 + $0x578] sm:$0xff]
        %v546 = vld [vmem:[%s306 + $0x580] sm:$0xff]
        %v547 = vld [vmem:[%s306 + $0x588] sm:$0xff]
        %v548 = vld [vmem:[%s306 + $0x590] sm:$0xff]
        %v549 = vld [vmem:[%s306 + $0x598] sm:$0xff]
        %v550 = vld [vmem:[%s306 + $0x5a0] sm:$0xff]
        %v551 = vld [vmem:[%s306 + $0x5a8] sm:$0xff]
        %v552 = vld [vmem:[%s306 + $0x5b0] sm:$0xff]
        %v553 = vld [vmem:[%s306 + $0x5b8] sm:$0xff]
        %v554 = vld [vmem:[%s306 + $0x5c0] sm:$0xff]
        %v555 = vld [vmem:[%s306 + $0x5c8] sm:$0xff]
        %v556 = vld [vmem:[%s306 + $0x5d0] sm:$0xff]
        %v557 = vld [vmem:[%s306 + $0x5d8] sm:$0xff]
        %v558 = vld [vmem:[%s306 + $0x5e0] sm:$0xff]
        %v559 = vld [vmem:[%s306 + $0x5e8] sm:$0xff]
        %v560 = vld [vmem:[%s306 + $0x5f0] sm:$0xff]
        %v561 = vld [vmem:[%s306 + $0x5f8] sm:$0xff]
        %v562 = vld [vmem:[%s306 + $0x600] sm:$0xff]
        %v563 = vld [vmem:[%s306 + $0x608] sm:$0xff]
        %v564 = vld [vmem:[%s306 + $0x610] sm:$0xff]
        %v565 = vld [vmem:[%s306 + $0x618] sm:$0xff]
        %v566 = vld [vmem:[%s306 + $0x620] sm:$0xff]
        %v567 = vld [vmem:[%s306 + $0x628] sm:$0xff]
        %v568 = vld [vmem:[%s306 + $0x630] sm:$0xff]
        %v569 = vld [vmem:[%s306 + $0x638] sm:$0xff]
        %v570 = vld [vmem:[%s306 + $0x640] sm:$0xff]
        %v571 = vld [vmem:[%s306 + $0x648] sm:$0xff]
        %v572 = vld [vmem:[%s306 + $0x650] sm:$0xff]
        %v573 = vld [vmem:[%s306 + $0x658] sm:$0xff]
        %v574 = vld [vmem:[%s306 + $0x660] sm:$0xff]
        %v575 = vld [vmem:[%s306 + $0x668] sm:$0xff]
        %v576 = vld [vmem:[%s306 + $0x670] sm:$0xff]
        %v577 = vld [vmem:[%s306 + $0x678] sm:$0xff]
        %v578 = vld [vmem:[%s306 + $0x680] sm:$0xff]
        %v579 = vld [vmem:[%s306 + $0x688] sm:$0xff]
        %v580 = vld [vmem:[%s306 + $0x690] sm:$0xff]
        %v581 = vld [vmem:[%s306 + $0x698] sm:$0xff]
        %v582 = vld [vmem:[%s306 + $0x6a0] sm:$0xff]
        %v583 = vld [vmem:[%s306 + $0x6a8] sm:$0xff]
        %v584 = vld [vmem:[%s306 + $0x6b0] sm:$0xff]
        %v585 = vld [vmem:[%s306 + $0x6b8] sm:$0xff]
        %v586 = vld [vmem:[%s306 + $0x6c0] sm:$0xff]
        %v587 = vld [vmem:[%s306 + $0x6c8] sm:$0xff]
        %v588 = vld [vmem:[%s306 + $0x6d0] sm:$0xff]
        %v589 = vld [vmem:[%s306 + $0x6d8] sm:$0xff]
        %v590 = vld [vmem:[%s306 + $0x6e0] sm:$0xff]
        %v591 = vld [vmem:[%s306 + $0x6e8] sm:$0xff]
        %v592 = vld [vmem:[%s306 + $0x6f0] sm:$0xff]
        %v593 = vld [vmem:[%s306 + $0x6f8] sm:$0xff]
        %v594 = vld [vmem:[%s306 + $0x700] sm:$0xff]
        %v595 = vld [vmem:[%s306 + $0x708] sm:$0xff]
        %v596 = vld [vmem:[%s306 + $0x710] sm:$0xff]
        %v597 = vld [vmem:[%s306 + $0x718] sm:$0xff]
        %v598 = vld [vmem:[%s306 + $0x720] sm:$0xff]
        %v599 = vld [vmem:[%s306 + $0x728] sm:$0xff]
        %v600 = vld [vmem:[%s306 + $0x730] sm:$0xff]
        %v601 = vld [vmem:[%s306 + $0x738] sm:$0xff]
        %v602 = vld [vmem:[%s306 + $0x740] sm:$0xff]
        %v603 = vld [vmem:[%s306 + $0x748] sm:$0xff]
        %v604 = vld [vmem:[%s306 + $0x750] sm:$0xff]
        %v605 = vld [vmem:[%s306 + $0x758] sm:$0xff]
        %v606 = vld [vmem:[%s306 + $0x760] sm:$0xff]
        %v607 = vld [vmem:[%s306 + $0x768] sm:$0xff]
        %v608 = vld [vmem:[%s306 + $0x770] sm:$0xff]
        %v609 = vld [vmem:[%s306 + $0x778] sm:$0xff]
        %v610 = vld [vmem:[%s306 + $0x780] sm:$0xff]
        %v611 = vld [vmem:[%s306 + $0x788] sm:$0xff]
        %v612 = vld [vmem:[%s306 + $0x790] sm:$0xff]
        %v613 = vld [vmem:[%s306 + $0x798] sm:$0xff]
        %v614 = vld [vmem:[%s306 + $0x7a0] sm:$0xff]
        %v615 = vld [vmem:[%s306 + $0x7a8] sm:$0xff]
        %v616 = vld [vmem:[%s306 + $0x7b0] sm:$0xff]
        %v617 = vld [vmem:[%s306 + $0x7b8] sm:$0xff]
        %v618 = vld [vmem:[%s306 + $0x7c0] sm:$0xff]
        %v619 = vld [vmem:[%s306 + $0x7c8] sm:$0xff]
        %v620 = vld [vmem:[%s306 + $0x7d0] sm:$0xff]
        %v621 = vld [vmem:[%s306 + $0x7d8] sm:$0xff]
        %v622 = vld [vmem:[%s306 + $0x7e0] sm:$0xff]
        %v623 = vld [vmem:[%s306 + $0x7e8] sm:$0xff]
        %v624 = vld [vmem:[%s306 + $0x7f0] sm:$0xff]
        %v625 = vld [vmem:[%s306 + $0x7f8] sm:$0xff]
        %v630 = vcombine.high %v366, %v366
        %v632 = vunpack.c.l.s4 1983009808
        %v633 = vunpack.c.0.s8 %v632
        %v634 = vlaneseq
        %v635 = vshrl.u32 %v634, 7
        %v636 = vsub.s32 %v633, %v635
        %v637 = vrot.slane %v366, %v636
        %v639 = vunpack.c.l.s4 1983009808
        %v640 = vunpack.c.0.s8 %v639
        %v641 = vlaneseq
        %v642 = vshrl.u32 %v641, 7
        %v643 = vsub.s32 %v640, %v642
        %v644 = vrot.slane %v630, %v643
        %v645 = vcombine.high %v637, %v637
        %v646 = vcombine.high %v644, %v644
        %v647 = vcombine.high %v367, %v367
        %v649 = vunpack.c.l.s4 1983009808
        %v650 = vunpack.c.0.s8 %v649
        %v651 = vlaneseq
        %v652 = vshrl.u32 %v651, 7
        %v653 = vsub.s32 %v650, %v652
        %v654 = vrot.slane %v367, %v653
        %v656 = vunpack.c.l.s4 1983009808
        %v657 = vunpack.c.0.s8 %v656
        %v658 = vlaneseq
        %v659 = vshrl.u32 %v658, 7
        %v660 = vsub.s32 %v657, %v659
        %v661 = vrot.slane %v647, %v660
        %v662 = vcombine.high %v654, %v654
        %v663 = vcombine.high %v661, %v661
        %v664 = vcombine.high %v368, %v368
        %v666 = vunpack.c.l.s4 1983009808
        %v667 = vunpack.c.0.s8 %v666
        %v668 = vlaneseq
        %v669 = vshrl.u32 %v668, 7
        %v670 = vsub.s32 %v667, %v669
        %v671 = vrot.slane %v368, %v670
        %v673 = vunpack.c.l.s4 1983009808
        %v674 = vunpack.c.0.s8 %v673
        %v675 = vlaneseq
        %v676 = vshrl.u32 %v675, 7
        %v677 = vsub.s32 %v674, %v676
        %v678 = vrot.slane %v664, %v677
        %v679 = vcombine.high %v671, %v671
        %v680 = vcombine.high %v678, %v678
        %v681 = vcombine.high %v369, %v369
        %v683 = vunpack.c.l.s4 1983009808
        %v684 = vunpack.c.0.s8 %v683
        %v685 = vlaneseq
        %v686 = vshrl.u32 %v685, 7
        %v687 = vsub.s32 %v684, %v686
        %v688 = vrot.slane %v369, %v687
        %v690 = vunpack.c.l.s4 1983009808
        %v691 = vunpack.c.0.s8 %v690
        %v692 = vlaneseq
        %v693 = vshrl.u32 %v692, 7
        %v694 = vsub.s32 %v691, %v693
        %v695 = vrot.slane %v681, %v694
        %v696 = vcombine.high %v688, %v688
        %v697 = vcombine.high %v695, %v695
        %714 = vmatprep.subr.mxu0 0.0
        %715 = vmatpush1.msra.mxu0 %v370
        %716 = vmatprep.subr.mxu0 0.0
        %717 = vmatpush1.msra.mxu0 %v371
        %718 = vmatprep.subr.mxu0 0.0
        %719 = vmatpush1.msra.mxu0 %v372
        %720 = vmatprep.subr.mxu0 0.0
        %721 = vmatpush1.msra.mxu0 %v373
        %722 = vmatprep.subr.mxu0 0.0
        %723 = vmatpush1.msra.mxu0 %v374
        %724 = vmatprep.subr.mxu0 0.0
        %725 = vmatpush1.msra.mxu0 %v375
        %726 = vmatprep.subr.mxu0 0.0
        %727 = vmatpush1.msra.mxu0 %v376
        %728 = vmatprep.subr.mxu0 0.0
        %729 = vmatpush1.msra.mxu0 %v377
        %730 = vmatprep.subr.mxu0 0.0
        %731 = vmatpush1.msra.mxu0 %v378
        %732 = vmatprep.subr.mxu0 0.0
        %733 = vmatpush1.msra.mxu0 %v379
        %734 = vmatprep.subr.mxu0 0.0
        %735 = vmatpush1.msra.mxu0 %v380
        %736 = vmatprep.subr.mxu0 0.0
        %737 = vmatpush1.msra.mxu0 %v381
        %738 = vmatprep.subr.mxu0 0.0
        %739 = vmatpush1.msra.mxu0 %v382
        %740 = vmatprep.subr.mxu0 0.0
        %741 = vmatpush1.msra.mxu0 %v383
        %742 = vmatprep.subr.mxu0 0.0
        %743 = vmatpush1.msra.mxu0 %v384
        %744 = vmatprep.subr.mxu0 0.0
        %745 = vmatpush1.msra.mxu0 %v385
        %746 = vmatprep.subr.mxu0 0.0
        %747 = vmatpush1.msra.mxu0 %v386
        %748 = vmatprep.subr.mxu0 0.0
        %749 = vmatpush1.msra.mxu0 %v387
        %750 = vmatprep.subr.mxu0 0.0
        %751 = vmatpush1.msra.mxu0 %v388
        %752 = vmatprep.subr.mxu0 0.0
        %753 = vmatpush1.msra.mxu0 %v389
        %754 = vmatprep.subr.mxu0 0.0
        %755 = vmatpush1.msra.mxu0 %v390
        %756 = vmatprep.subr.mxu0 0.0
        %757 = vmatpush1.msra.mxu0 %v391
        %758 = vmatprep.subr.mxu0 0.0
        %759 = vmatpush1.msra.mxu0 %v392
        %760 = vmatprep.subr.mxu0 0.0
        %761 = vmatpush1.msra.mxu0 %v393
        %762 = vmatprep.subr.mxu0 0.0
        %763 = vmatpush1.msra.mxu0 %v394
        %764 = vmatprep.subr.mxu0 0.0
        %765 = vmatpush1.msra.mxu0 %v395
        %766 = vmatprep.subr.mxu0 0.0
        %767 = vmatpush1.msra.mxu0 %v396
        %768 = vmatprep.subr.mxu0 0.0
        %769 = vmatpush1.msra.mxu0 %v397
        %770 = vmatprep.subr.mxu0 0.0
        %771 = vmatpush1.msra.mxu0 %v398
        %772 = vmatprep.subr.mxu0 0.0
        %773 = vmatpush1.msra.mxu0 %v399
        %774 = vmatprep.subr.mxu0 0.0
        %775 = vmatpush1.msra.mxu0 %v400
        %776 = vmatprep.subr.mxu0 0.0
        %777 = vmatpush1.msra.mxu0 %v401
        %778 = vmatprep.mubr.f32.mxu0 %v645
        %779 = vmatmul.mubr.f32.gmra.mrb[0].mxu0 %v637
        %v780 = vpop.f32.mrb[0].mxu0
        %v781 = vadd.f32 0.0, %v780
        %v782 = vpop.f32.mrb[0].mxu0
        %783 = vdwg.mxu0
        %784 = vmatprep.subr.mxu0 0.0
        %785 = vmatpush1.msra.mxu0 %v402
        %786 = vmatprep.subr.mxu0 0.0
        %787 = vmatpush1.msra.mxu0 %v403
        %788 = vmatprep.subr.mxu0 0.0
        %789 = vmatpush1.msra.mxu0 %v404
        %790 = vmatprep.subr.mxu0 0.0
        %791 = vmatpush1.msra.mxu0 %v405
        %792 = vmatprep.subr.mxu0 0.0
        %793 = vmatpush1.msra.mxu0 %v406
        %794 = vmatprep.subr.mxu0 0.0
        %795 = vmatpush1.msra.mxu0 %v407
        %796 = vmatprep.subr.mxu0 0.0
        %797 = vmatpush1.msra.mxu0 %v408
        %798 = vmatprep.subr.mxu0 0.0
        %799 = vmatpush1.msra.mxu0 %v409
        %800 = vmatprep.subr.mxu0 0.0
        %801 = vmatpush1.msra.mxu0 %v410
        %802 = vmatprep.subr.mxu0 0.0
        %803 = vmatpush1.msra.mxu0 %v411
        %804 = vmatprep.subr.mxu0 0.0
        %805 = vmatpush1.msra.mxu0 %v412
        %806 = vmatprep.subr.mxu0 0.0
        %807 = vmatpush1.msra.mxu0 %v413
        %808 = vmatprep.subr.mxu0 0.0
        %809 = vmatpush1.msra.mxu0 %v414
        %810 = vmatprep.subr.mxu0 0.0
        %811 = vmatpush1.msra.mxu0 %v415
        %812 = vmatprep.subr.mxu0 0.0
        %813 = vmatpush1.msra.mxu0 %v416
        %814 = vmatprep.subr.mxu0 0.0
        %815 = vmatpush1.msra.mxu0 %v417
        %816 = vmatprep.subr.mxu0 0.0
        %817 = vmatpush1.msra.mxu0 %v418
        %818 = vmatprep.subr.mxu0 0.0
        %819 = vmatpush1.msra.mxu0 %v419
        %820 = vmatprep.subr.mxu0 0.0
        %821 = vmatpush1.msra.mxu0 %v420
        %822 = vmatprep.subr.mxu0 0.0
        %823 = vmatpush1.msra.mxu0 %v421
        %824 = vmatprep.subr.mxu0 0.0
        %825 = vmatpush1.msra.mxu0 %v422
        %826 = vmatprep.subr.mxu0 0.0
        %827 = vmatpush1.msra.mxu0 %v423
        %828 = vmatprep.subr.mxu0 0.0
        %829 = vmatpush1.msra.mxu0 %v424
        %830 = vmatprep.subr.mxu0 0.0
        %831 = vmatpush1.msra.mxu0 %v425
        %832 = vmatprep.subr.mxu0 0.0
        %833 = vmatpush1.msra.mxu0 %v426
        %834 = vmatprep.subr.mxu0 0.0
        %835 = vmatpush1.msra.mxu0 %v427
        %836 = vmatprep.subr.mxu0 0.0
        %837 = vmatpush1.msra.mxu0 %v428
        %838 = vmatprep.subr.mxu0 0.0
        %839 = vmatpush1.msra.mxu0 %v429
        %840 = vmatprep.subr.mxu0 0.0
        %841 = vmatpush1.msra.mxu0 %v430
        %842 = vmatprep.subr.mxu0 0.0
        %843 = vmatpush1.msra.mxu0 %v431
        %844 = vmatprep.subr.mxu0 0.0
        %845 = vmatpush1.msra.mxu0 %v432
        %846 = vmatprep.subr.mxu0 0.0
        %847 = vmatpush1.msra.mxu0 %v433
        %848 = vmatprep.mubr.f32.mxu0 %v646
        %849 = vmatmul.mubr.f32.gmra.mrb[0].mxu0 %v644
        %v850 = vpop.f32.mrb[0].mxu0
        %v851 = vadd.f32 %v781, %v850
        %v852 = vpop.f32.mrb[0].mxu0
        %853 = vdwg.mxu0
        %854 = vmatprep.subr.mxu0 0.0
        %855 = vmatpush1.msra.mxu0 %v434
        %856 = vmatprep.subr.mxu0 0.0
        %857 = vmatpush1.msra.mxu0 %v435
        %858 = vmatprep.subr.mxu0 0.0
        %859 = vmatpush1.msra.mxu0 %v436
        %860 = vmatprep.subr.mxu0 0.0
        %861 = vmatpush1.msra.mxu0 %v437
        %862 = vmatprep.subr.mxu0 0.0
        %863 = vmatpush1.msra.mxu0 %v438
        %864 = vmatprep.subr.mxu0 0.0
        %865 = vmatpush1.msra.mxu0 %v439
        %866 = vmatprep.subr.mxu0 0.0
        %867 = vmatpush1.msra.mxu0 %v440
        %868 = vmatprep.subr.mxu0 0.0
        %869 = vmatpush1.msra.mxu0 %v441
        %870 = vmatprep.subr.mxu0 0.0
        %871 = vmatpush1.msra.mxu0 %v442
        %872 = vmatprep.subr.mxu0 0.0
        %873 = vmatpush1.msra.mxu0 %v443
        %874 = vmatprep.subr.mxu0 0.0
        %875 = vmatpush1.msra.mxu0 %v444
        %876 = vmatprep.subr.mxu0 0.0
        %877 = vmatpush1.msra.mxu0 %v445
        %878 = vmatprep.subr.mxu0 0.0
        %879 = vmatpush1.msra.mxu0 %v446
        %880 = vmatprep.subr.mxu0 0.0
        %881 = vmatpush1.msra.mxu0 %v447
        %882 = vmatprep.subr.mxu0 0.0
        %883 = vmatpush1.msra.mxu0 %v448
        %884 = vmatprep.subr.mxu0 0.0
        %885 = vmatpush1.msra.mxu0 %v449
        %886 = vmatprep.subr.mxu0 0.0
        %887 = vmatpush1.msra.mxu0 %v450
        %888 = vmatprep.subr.mxu0 0.0
        %889 = vmatpush1.msra.mxu0 %v451
        %890 = vmatprep.subr.mxu0 0.0
        %891 = vmatpush1.msra.mxu0 %v452
        %892 = vmatprep.subr.mxu0 0.0
        %893 = vmatpush1.msra.mxu0 %v453
        %894 = vmatprep.subr.mxu0 0.0
        %895 = vmatpush1.msra.mxu0 %v454
        %896 = vmatprep.subr.mxu0 0.0
        %897 = vmatpush1.msra.mxu0 %v455
        %898 = vmatprep.subr.mxu0 0.0
        %899 = vmatpush1.msra.mxu0 %v456
        %900 = vmatprep.subr.mxu0 0.0
        %901 = vmatpush1.msra.mxu0 %v457
        %902 = vmatprep.subr.mxu0 0.0
        %903 = vmatpush1.msra.mxu0 %v458
        %904 = vmatprep.subr.mxu0 0.0
        %905 = vmatpush1.msra.mxu0 %v459
        %906 = vmatprep.subr.mxu0 0.0
        %907 = vmatpush1.msra.mxu0 %v460
        %908 = vmatprep.subr.mxu0 0.0
        %909 = vmatpush1.msra.mxu0 %v461
        %910 = vmatprep.subr.mxu0 0.0
        %911 = vmatpush1.msra.mxu0 %v462
        %912 = vmatprep.subr.mxu0 0.0
        %913 = vmatpush1.msra.mxu0 %v463
        %914 = vmatprep.subr.mxu0 0.0
        %915 = vmatpush1.msra.mxu0 %v464
        %916 = vmatprep.subr.mxu0 0.0
        %917 = vmatpush1.msra.mxu0 %v465
        %918 = vmatprep.mubr.f32.mxu0 %v662
        %919 = vmatmul.mubr.f32.gmra.mrb[0].mxu0 %v654
        %v920 = vpop.f32.mrb[0].mxu0
        %v921 = vadd.f32 %v851, %v920
        %v922 = vpop.f32.mrb[0].mxu0
        %923 = vdwg.mxu0
        %924 = vmatprep.subr.mxu0 0.0
        %925 = vmatpush1.msra.mxu0 %v466
        %926 = vmatprep.subr.mxu0 0.0
        %927 = vmatpush1.msra.mxu0 %v467
        %928 = vmatprep.subr.mxu0 0.0
        %929 = vmatpush1.msra.mxu0 %v468
        %930 = vmatprep.subr.mxu0 0.0
        %931 = vmatpush1.msra.mxu0 %v469
        %932 = vmatprep.subr.mxu0 0.0
        %933 = vmatpush1.msra.mxu0 %v470
        %934 = vmatprep.subr.mxu0 0.0
        %935 = vmatpush1.msra.mxu0 %v471
        %936 = vmatprep.subr.mxu0 0.0
        %937 = vmatpush1.msra.mxu0 %v472
        %938 = vmatprep.subr.mxu0 0.0
        %939 = vmatpush1.msra.mxu0 %v473
        %940 = vmatprep.subr.mxu0 0.0
        %941 = vmatpush1.msra.mxu0 %v474
        %942 = vmatprep.subr.mxu0 0.0
        %943 = vmatpush1.msra.mxu0 %v475
        %944 = vmatprep.subr.mxu0 0.0
        %945 = vmatpush1.msra.mxu0 %v476
        %946 = vmatprep.subr.mxu0 0.0
        %947 = vmatpush1.msra.mxu0 %v477
        %948 = vmatprep.subr.mxu0 0.0
        %949 = vmatpush1.msra.mxu0 %v478
        %950 = vmatprep.subr.mxu0 0.0
        %951 = vmatpush1.msra.mxu0 %v479
        %952 = vmatprep.subr.mxu0 0.0
        %953 = vmatpush1.msra.mxu0 %v480
        %954 = vmatprep.subr.mxu0 0.0
        %955 = vmatpush1.msra.mxu0 %v481
        %956 = vmatprep.subr.mxu0 0.0
        %957 = vmatpush1.msra.mxu0 %v482
        %958 = vmatprep.subr.mxu0 0.0
        %959 = vmatpush1.msra.mxu0 %v483
        %960 = vmatprep.subr.mxu0 0.0
        %961 = vmatpush1.msra.mxu0 %v484
        %962 = vmatprep.subr.mxu0 0.0
        %963 = vmatpush1.msra.mxu0 %v485
        %964 = vmatprep.subr.mxu0 0.0
        %965 = vmatpush1.msra.mxu0 %v486
        %966 = vmatprep.subr.mxu0 0.0
        %967 = vmatpush1.msra.mxu0 %v487
        %968 = vmatprep.subr.mxu0 0.0
        %969 = vmatpush1.msra.mxu0 %v488
        %970 = vmatprep.subr.mxu0 0.0
        %971 = vmatpush1.msra.mxu0 %v489
        %972 = vmatprep.subr.mxu0 0.0
        %973 = vmatpush1.msra.mxu0 %v490
        %974 = vmatprep.subr.mxu0 0.0
        %975 = vmatpush1.msra.mxu0 %v491
        %976 = vmatprep.subr.mxu0 0.0
        %977 = vmatpush1.msra.mxu0 %v492
        %978 = vmatprep.subr.mxu0 0.0
        %979 = vmatpush1.msra.mxu0 %v493
        %980 = vmatprep.subr.mxu0 0.0
        %981 = vmatpush1.msra.mxu0 %v494
        %982 = vmatprep.subr.mxu0 0.0
        %983 = vmatpush1.msra.mxu0 %v495
        %984 = vmatprep.subr.mxu0 0.0
        %985 = vmatpush1.msra.mxu0 %v496
        %986 = vmatprep.subr.mxu0 0.0
        %987 = vmatpush1.msra.mxu0 %v497
        %988 = vmatprep.mubr.f32.mxu0 %v663
        %989 = vmatmul.mubr.f32.gmra.mrb[0].mxu0 %v661
        %v990 = vpop.f32.mrb[0].mxu0
        %v991 = vadd.f32 %v921, %v990
        %v992 = vpop.f32.mrb[0].mxu0
        %993 = vdwg.mxu0
        %994 = vmatprep.subr.mxu0 0.0
        %995 = vmatpush1.msra.mxu0 %v498
        %996 = vmatprep.subr.mxu0 0.0
        %997 = vmatpush1.msra.mxu0 %v499
        %998 = vmatprep.subr.mxu0 0.0
        %999 = vmatpush1.msra.mxu0 %v500
        %1000 = vmatprep.subr.mxu0 0.0
        %1001 = vmatpush1.msra.mxu0 %v501
        %1002 = vmatprep.subr.mxu0 0.0
        %1003 = vmatpush1.msra.mxu0 %v502
        %1004 = vmatprep.subr.mxu0 0.0
        %1005 = vmatpush1.msra.mxu0 %v503
        %1006 = vmatprep.subr.mxu0 0.0
        %1007 = vmatpush1.msra.mxu0 %v504
        %1008 = vmatprep.subr.mxu0 0.0
        %1009 = vmatpush1.msra.mxu0 %v505
        %1010 = vmatprep.subr.mxu0 0.0
        %1011 = vmatpush1.msra.mxu0 %v506
        %1012 = vmatprep.subr.mxu0 0.0
        %1013 = vmatpush1.msra.mxu0 %v507
        %1014 = vmatprep.subr.mxu0 0.0
        %1015 = vmatpush1.msra.mxu0 %v508
        %1016 = vmatprep.subr.mxu0 0.0
        %1017 = vmatpush1.msra.mxu0 %v509
        %1018 = vmatprep.subr.mxu0 0.0
        %1019 = vmatpush1.msra.mxu0 %v510
        %1020 = vmatprep.subr.mxu0 0.0
        %1021 = vmatpush1.msra.mxu0 %v511
        %1022 = vmatprep.subr.mxu0 0.0
        %1023 = vmatpush1.msra.mxu0 %v512
        %1024 = vmatprep.subr.mxu0 0.0
        %1025 = vmatpush1.msra.mxu0 %v513
        %1026 = vmatprep.subr.mxu0 0.0
        %1027 = vmatpush1.msra.mxu0 %v514
        %1028 = vmatprep.subr.mxu0 0.0
        %1029 = vmatpush1.msra.mxu0 %v515
        %1030 = vmatprep.subr.mxu0 0.0
        %1031 = vmatpush1.msra.mxu0 %v516
        %1032 = vmatprep.subr.mxu0 0.0
        %1033 = vmatpush1.msra.mxu0 %v517
        %1034 = vmatprep.subr.mxu0 0.0
        %1035 = vmatpush1.msra.mxu0 %v518
        %1036 = vmatprep.subr.mxu0 0.0
        %1037 = vmatpush1.msra.mxu0 %v519
        %1038 = vmatprep.subr.mxu0 0.0
        %1039 = vmatpush1.msra.mxu0 %v520
        %1040 = vmatprep.subr.mxu0 0.0
        %1041 = vmatpush1.msra.mxu0 %v521
        %1042 = vmatprep.subr.mxu0 0.0
        %1043 = vmatpush1.msra.mxu0 %v522
        %1044 = vmatprep.subr.mxu0 0.0
        %1045 = vmatpush1.msra.mxu0 %v523
        %1046 = vmatprep.subr.mxu0 0.0
        %1047 = vmatpush1.msra.mxu0 %v524
        %1048 = vmatprep.subr.mxu0 0.0
        %1049 = vmatpush1.msra.mxu0 %v525
        %1050 = vmatprep.subr.mxu0 0.0
        %1051 = vmatpush1.msra.mxu0 %v526
        %1052 = vmatprep.subr.mxu0 0.0
        %1053 = vmatpush1.msra.mxu0 %v527
        %1054 = vmatprep.subr.mxu0 0.0
        %1055 = vmatpush1.msra.mxu0 %v528
        %1056 = vmatprep.subr.mxu0 0.0
        %1057 = vmatpush1.msra.mxu0 %v529
        %1058 = vmatprep.mubr.f32.mxu0 %v679
        %1059 = vmatmul.mubr.f32.gmra.mrb[0].mxu0 %v671
        %v1060 = vpop.f32.mrb[0].mxu0
        %v1061 = vadd.f32 %v991, %v1060
        %v1062 = vpop.f32.mrb[0].mxu0
        %1063 = vdwg.mxu0
        %1064 = vmatprep.subr.mxu0 0.0
        %1065 = vmatpush1.msra.mxu0 %v530
        %1066 = vmatprep.subr.mxu0 0.0
        %1067 = vmatpush1.msra.mxu0 %v531
        %1068 = vmatprep.subr.mxu0 0.0
        %1069 = vmatpush1.msra.mxu0 %v532
        %1070 = vmatprep.subr.mxu0 0.0
        %1071 = vmatpush1.msra.mxu0 %v533
        %1072 = vmatprep.subr.mxu0 0.0
        %1073 = vmatpush1.msra.mxu0 %v534
        %1074 = vmatprep.subr.mxu0 0.0
        %1075 = vmatpush1.msra.mxu0 %v535
        %1076 = vmatprep.subr.mxu0 0.0
        %1077 = vmatpush1.msra.mxu0 %v536
        %1078 = vmatprep.subr.mxu0 0.0
        %1079 = vmatpush1.msra.mxu0 %v537
        %1080 = vmatprep.subr.mxu0 0.0
        %1081 = vmatpush1.msra.mxu0 %v538
        %1082 = vmatprep.subr.mxu0 0.0
        %1083 = vmatpush1.msra.mxu0 %v539
        %1084 = vmatprep.subr.mxu0 0.0
        %1085 = vmatpush1.msra.mxu0 %v540
        %1086 = vmatprep.subr.mxu0 0.0
        %1087 = vmatpush1.msra.mxu0 %v541
        %1088 = vmatprep.subr.mxu0 0.0
        %1089 = vmatpush1.msra.mxu0 %v542
        %1090 = vmatprep.subr.mxu0 0.0
        %1091 = vmatpush1.msra.mxu0 %v543
        %1092 = vmatprep.subr.mxu0 0.0
        %1093 = vmatpush1.msra.mxu0 %v544
        %1094 = vmatprep.subr.mxu0 0.0
        %1095 = vmatpush1.msra.mxu0 %v545
        %1096 = vmatprep.subr.mxu0 0.0
        %1097 = vmatpush1.msra.mxu0 %v546
        %1098 = vmatprep.subr.mxu0 0.0
        %1099 = vmatpush1.msra.mxu0 %v547
        %1100 = vmatprep.subr.mxu0 0.0
        %1101 = vmatpush1.msra.mxu0 %v548
        %1102 = vmatprep.subr.mxu0 0.0
        %1103 = vmatpush1.msra.mxu0 %v549
        %1104 = vmatprep.subr.mxu0 0.0
        %1105 = vmatpush1.msra.mxu0 %v550
        %1106 = vmatprep.subr.mxu0 0.0
        %1107 = vmatpush1.msra.mxu0 %v551
        %1108 = vmatprep.subr.mxu0 0.0
        %1109 = vmatpush1.msra.mxu0 %v552
        %1110 = vmatprep.subr.mxu0 0.0
        %1111 = vmatpush1.msra.mxu0 %v553
        %1112 = vmatprep.subr.mxu0 0.0
        %1113 = vmatpush1.msra.mxu0 %v554
        %1114 = vmatprep.subr.mxu0 0.0
        %1115 = vmatpush1.msra.mxu0 %v555
        %1116 = vmatprep.subr.mxu0 0.0
        %1117 = vmatpush1.msra.mxu0 %v556
        %1118 = vmatprep.subr.mxu0 0.0
        %1119 = vmatpush1.msra.mxu0 %v557
        %1120 = vmatprep.subr.mxu0 0.0
        %1121 = vmatpush1.msra.mxu0 %v558
        %1122 = vmatprep.subr.mxu0 0.0
        %1123 = vmatpush1.msra.mxu0 %v559
        %1124 = vmatprep.subr.mxu0 0.0
        %1125 = vmatpush1.msra.mxu0 %v560
        %1126 = vmatprep.subr.mxu0 0.0
        %1127 = vmatpush1.msra.mxu0 %v561
        %1128 = vmatprep.mubr.f32.mxu0 %v680
        %1129 = vmatmul.mubr.f32.gmra.mrb[0].mxu0 %v678
        %v1130 = vpop.f32.mrb[0].mxu0
        %v1131 = vadd.f32 %v1061, %v1130
        %v1132 = vpop.f32.mrb[0].mxu0
        %1133 = vdwg.mxu0
        %1134 = vmatprep.subr.mxu0 0.0
        %1135 = vmatpush1.msra.mxu0 %v562
        %1136 = vmatprep.subr.mxu0 0.0
        %1137 = vmatpush1.msra.mxu0 %v563
        %1138 = vmatprep.subr.mxu0 0.0
        %1139 = vmatpush1.msra.mxu0 %v564
        %1140 = vmatprep.subr.mxu0 0.0
        %1141 = vmatpush1.msra.mxu0 %v565
        %1142 = vmatprep.subr.mxu0 0.0
        %1143 = vmatpush1.msra.mxu0 %v566
        %1144 = vmatprep.subr.mxu0 0.0
        %1145 = vmatpush1.msra.mxu0 %v567
        %1146 = vmatprep.subr.mxu0 0.0
        %1147 = vmatpush1.msra.mxu0 %v568
        %1148 = vmatprep.subr.mxu0 0.0
        %1149 = vmatpush1.msra.mxu0 %v569
        %1150 = vmatprep.subr.mxu0 0.0
        %1151 = vmatpush1.msra.mxu0 %v570
        %1152 = vmatprep.subr.mxu0 0.0
        %1153 = vmatpush1.msra.mxu0 %v571
        %1154 = vmatprep.subr.mxu0 0.0
        %1155 = vmatpush1.msra.mxu0 %v572
        %1156 = vmatprep.subr.mxu0 0.0
        %1157 = vmatpush1.msra.mxu0 %v573
        %1158 = vmatprep.subr.mxu0 0.0
        %1159 = vmatpush1.msra.mxu0 %v574
        %1160 = vmatprep.subr.mxu0 0.0
        %1161 = vmatpush1.msra.mxu0 %v575
        %1162 = vmatprep.subr.mxu0 0.0
        %1163 = vmatpush1.msra.mxu0 %v576
        %1164 = vmatprep.subr.mxu0 0.0
        %1165 = vmatpush1.msra.mxu0 %v577
        %1166 = vmatprep.subr.mxu0 0.0
        %1167 = vmatpush1.msra.mxu0 %v578
        %1168 = vmatprep.subr.mxu0 0.0
        %1169 = vmatpush1.msra.mxu0 %v579
        %1170 = vmatprep.subr.mxu0 0.0
        %1171 = vmatpush1.msra.mxu0 %v580
        %1172 = vmatprep.subr.mxu0 0.0
        %1173 = vmatpush1.msra.mxu0 %v581
        %1174 = vmatprep.subr.mxu0 0.0
        %1175 = vmatpush1.msra.mxu0 %v582
        %1176 = vmatprep.subr.mxu0 0.0
        %1177 = vmatpush1.msra.mxu0 %v583
        %1178 = vmatprep.subr.mxu0 0.0
        %1179 = vmatpush1.msra.mxu0 %v584
        %1180 = vmatprep.subr.mxu0 0.0
        %1181 = vmatpush1.msra.mxu0 %v585
        %1182 = vmatprep.subr.mxu0 0.0
        %1183 = vmatpush1.msra.mxu0 %v586
        %1184 = vmatprep.subr.mxu0 0.0
        %1185 = vmatpush1.msra.mxu0 %v587
        %1186 = vmatprep.subr.mxu0 0.0
        %1187 = vmatpush1.msra.mxu0 %v588
        %1188 = vmatprep.subr.mxu0 0.0
        %1189 = vmatpush1.msra.mxu0 %v589
        %1190 = vmatprep.subr.mxu0 0.0
        %1191 = vmatpush1.msra.mxu0 %v590
        %1192 = vmatprep.subr.mxu0 0.0
        %1193 = vmatpush1.msra.mxu0 %v591
        %1194 = vmatprep.subr.mxu0 0.0
        %1195 = vmatpush1.msra.mxu0 %v592
        %1196 = vmatprep.subr.mxu0 0.0
        %1197 = vmatpush1.msra.mxu0 %v593
        %1198 = vmatprep.mubr.f32.mxu0 %v696
        %1199 = vmatmul.mubr.f32.gmra.mrb[0].mxu0 %v688
        %v1200 = vpop.f32.mrb[0].mxu0
        %v1201 = vadd.f32 %v1131, %v1200
        %v1202 = vpop.f32.mrb[0].mxu0
        %1203 = vdwg.mxu0
        %1204 = vmatprep.subr.mxu0 0.0
        %1205 = vmatpush1.msra.mxu0 %v594
        %1206 = vmatprep.subr.mxu0 0.0
        %1207 = vmatpush1.msra.mxu0 %v595
        %1208 = vmatprep.subr.mxu0 0.0
        %1209 = vmatpush1.msra.mxu0 %v596
        %1210 = vmatprep.subr.mxu0 0.0
        %1211 = vmatpush1.msra.mxu0 %v597
        %1212 = vmatprep.subr.mxu0 0.0
        %1213 = vmatpush1.msra.mxu0 %v598
        %1214 = vmatprep.subr.mxu0 0.0
        %1215 = vmatpush1.msra.mxu0 %v599
        %1216 = vmatprep.subr.mxu0 0.0
        %1217 = vmatpush1.msra.mxu0 %v600
        %1218 = vmatprep.subr.mxu0 0.0
        %1219 = vmatpush1.msra.mxu0 %v601
        %1220 = vmatprep.subr.mxu0 0.0
        %1221 = vmatpush1.msra.mxu0 %v602
        %1222 = vmatprep.subr.mxu0 0.0
        %1223 = vmatpush1.msra.mxu0 %v603
        %1224 = vmatprep.subr.mxu0 0.0
        %1225 = vmatpush1.msra.mxu0 %v604
        %1226 = vmatprep.subr.mxu0 0.0
        %1227 = vmatpush1.msra.mxu0 %v605
        %1228 = vmatprep.subr.mxu0 0.0
        %1229 = vmatpush1.msra.mxu0 %v606
        %1230 = vmatprep.subr.mxu0 0.0
        %1231 = vmatpush1.msra.mxu0 %v607
        %1232 = vmatprep.subr.mxu0 0.0
        %1233 = vmatpush1.msra.mxu0 %v608
        %1234 = vmatprep.subr.mxu0 0.0
        %1235 = vmatpush1.msra.mxu0 %v609
        %1236 = vmatprep.subr.mxu0 0.0
        %1237 = vmatpush1.msra.mxu0 %v610
        %1238 = vmatprep.subr.mxu0 0.0
        %1239 = vmatpush1.msra.mxu0 %v611
        %1240 = vmatprep.subr.mxu0 0.0
        %1241 = vmatpush1.msra.mxu0 %v612
        %1242 = vmatprep.subr.mxu0 0.0
        %1243 = vmatpush1.msra.mxu0 %v613
        %1244 = vmatprep.subr.mxu0 0.0
        %1245 = vmatpush1.msra.mxu0 %v614
        %1246 = vmatprep.subr.mxu0 0.0
        %1247 = vmatpush1.msra.mxu0 %v615
        %1248 = vmatprep.subr.mxu0 0.0
        %1249 = vmatpush1.msra.mxu0 %v616
        %1250 = vmatprep.subr.mxu0 0.0
        %1251 = vmatpush1.msra.mxu0 %v617
        %1252 = vmatprep.subr.mxu0 0.0
        %1253 = vmatpush1.msra.mxu0 %v618
        %1254 = vmatprep.subr.mxu0 0.0
        %1255 = vmatpush1.msra.mxu0 %v619
        %1256 = vmatprep.subr.mxu0 0.0
        %1257 = vmatpush1.msra.mxu0 %v620
        %1258 = vmatprep.subr.mxu0 0.0
        %1259 = vmatpush1.msra.mxu0 %v621
        %1260 = vmatprep.subr.mxu0 0.0
        %1261 = vmatpush1.msra.mxu0 %v622
        %1262 = vmatprep.subr.mxu0 0.0
        %1263 = vmatpush1.msra.mxu0 %v623
        %1264 = vmatprep.subr.mxu0 0.0
        %1265 = vmatpush1.msra.mxu0 %v624
        %1266 = vmatprep.subr.mxu0 0.0
        %1267 = vmatpush1.msra.mxu0 %v625
        %1268 = vmatprep.mubr.f32.mxu0 %v697
        %1269 = vmatmul.mubr.f32.gmra.mrb[0].mxu0 %v695
        %v1270 = vpop.f32.mrb[0].mxu0
        %v1271 = vadd.f32 %v1201, %v1270
        %v1272 = vpop.f32.mrb[0].mxu0
        %1273 = vdwg.mxu0
        %v1274 = vadd.f32 %v365, %v1271
        %1275 = vst [vmem:[#allocation2] sm:$0x3] %v1274
        %p1276 = scmp.eq.s32.totalorder %s24, 7
        // Predicated region
        $region73: #{model_forward.1} parent=47 // pred_check
          %p1277 = pneg %p1276
        $region74: #{model_forward.1} parent=47 // pred_check_branch
          %1279 = sbr.rel (%p1277) target = $region76
        $region75: #{model_forward.1} parent=47 // pred_region
          %v1280 = vld [vmem:[#allocation2] sm:$0x3]
          %v1281 = vld [vmem:[#allocation6] sm:$0x1]
          %v1283 = vlaneseq
          %v1284 = vshrl.u32 %v1283, 7
          %v1285 = vsub.s32 0, %v1284
          %v1286 = vrot.slane %v1281, %v1285
          %v1288 = vadd.f32 %v1280, %v1286
          %v1289 = vmax.f32 %v1288, 0.0
          %v1290 = vld [vmem:[%s3] sm:$0xff]
          %v1291 = vld [vmem:[%s3 + $0x8] sm:$0xff]
          %v1292 = vld [vmem:[%s3 + $0x10] sm:$0xff]
          %v1293 = vld [vmem:[%s3 + $0x18] sm:$0xff]
          %v1294 = vld [vmem:[%s3 + $0x20] sm:$0xff]
          %v1295 = vld [vmem:[%s3 + $0x28] sm:$0xff]
          %v1296 = vld [vmem:[%s3 + $0x30] sm:$0xff]
          %v1297 = vld [vmem:[%s3 + $0x38] sm:$0xff]
          %v1298 = vld [vmem:[%s3 + $0x40] sm:$0xff]
          %v1299 = vld [vmem:[%s3 + $0x48] sm:$0xff]
          %v1300 = vld [vmem:[%s3 + $0x50] sm:$0xff]
          %v1301 = vld [vmem:[%s3 + $0x58] sm:$0xff]
          %v1302 = vld [vmem:[%s3 + $0x60] sm:$0xff]
          %v1303 = vld [vmem:[%s3 + $0x68] sm:$0xff]
          %v1304 = vld [vmem:[%s3 + $0x70] sm:$0xff]
          %v1305 = vld [vmem:[%s3 + $0x78] sm:$0xff]
          %v1306 = vld [vmem:[#allocation8] sm:$0x1]
          %v1308 = vlaneseq
          %v1309 = vshrl.u32 %v1308, 7
          %v1310 = vsub.s32 0, %v1309
          %v1311 = vrot.slane %v1306, %v1310
          %1313 = vmatprep.subr.mxu0 0.0
          %1314 = vmatpush1.msra.mxu0 %v1290
          %1315 = vmatprep.subr.mxu0 0.0
          %1316 = vmatpush1.msra.mxu0 %v1291
          %1317 = vmatprep.subr.mxu0 0.0
          %1318 = vmatpush1.msra.mxu0 %v1292
          %1319 = vmatprep.subr.mxu0 0.0
          %1320 = vmatpush1.msra.mxu0 %v1293
          %1321 = vmatprep.subr.mxu0 0.0
          %1322 = vmatpush1.msra.mxu0 %v1294
          %1323 = vmatprep.subr.mxu0 0.0
          %1324 = vmatpush1.msra.mxu0 %v1295
          %1325 = vmatprep.subr.mxu0 0.0
          %1326 = vmatpush1.msra.mxu0 %v1296
          %1327 = vmatprep.subr.mxu0 0.0
          %1328 = vmatpush1.msra.mxu0 %v1297
          %1329 = vmatprep.subr.mxu0 0.0
          %1330 = vmatpush1.msra.mxu0 %v1298
          %1331 = vmatprep.subr.mxu0 0.0
          %1332 = vmatpush1.msra.mxu0 %v1299
          %1333 = vmatprep.subr.mxu0 0.0
          %1334 = vmatpush1.msra.mxu0 %v1300
          %1335 = vmatprep.subr.mxu0 0.0
          %1336 = vmatpush1.msra.mxu0 %v1301
          %1337 = vmatprep.subr.mxu0 0.0
          %1338 = vmatpush1.msra.mxu0 %v1302
          %1339 = vmatprep.subr.mxu0 0.0
          %1340 = vmatpush1.msra.mxu0 %v1303
          %1341 = vmatprep.subr.mxu0 0.0
          %1342 = vmatpush1.msra.mxu0 %v1304
          %1343 = vmatprep.subr.mxu0 0.0
          %1344 = vmatpush1.msra.mxu0 %v1305
          %1345 = vmatprep.subr.mxu0 0.0
          %1346 = vmatpush1.msra.mxu0 0.0
          %1347 = vmatprep.subr.mxu0 0.0
          %1348 = vmatpush1.msra.mxu0 0.0
          %1349 = vmatprep.subr.mxu0 0.0
          %1350 = vmatpush1.msra.mxu0 0.0
          %1351 = vmatprep.subr.mxu0 0.0
          %1352 = vmatpush1.msra.mxu0 0.0
          %1353 = vmatprep.subr.mxu0 0.0
          %1354 = vmatpush1.msra.mxu0 0.0
          %1355 = vmatprep.subr.mxu0 0.0
          %1356 = vmatpush1.msra.mxu0 0.0
          %1357 = vmatprep.subr.mxu0 0.0
          %1358 = vmatpush1.msra.mxu0 0.0
          %1359 = vmatprep.subr.mxu0 0.0
          %1360 = vmatpush1.msra.mxu0 0.0
          %1361 = vmatprep.subr.mxu0 0.0
          %1362 = vmatpush1.msra.mxu0 0.0
          %1363 = vmatprep.subr.mxu0 0.0
          %1364 = vmatpush1.msra.mxu0 0.0
          %1365 = vmatprep.subr.mxu0 0.0
          %1366 = vmatpush1.msra.mxu0 0.0
          %1367 = vmatprep.subr.mxu0 0.0
          %1368 = vmatpush1.msra.mxu0 0.0
          %1369 = vmatprep.subr.mxu0 0.0
          %1370 = vmatpush1.msra.mxu0 0.0
          %1371 = vmatprep.subr.mxu0 0.0
          %1372 = vmatpush1.msra.mxu0 0.0
          %1373 = vmatprep.subr.mxu0 0.0
          %1374 = vmatpush1.msra.mxu0 0.0
          %1375 = vmatprep.subr.mxu0 0.0
          %1376 = vmatpush1.msra.mxu0 0.0
          %1377 = vmatprep.mubr.f32.mxu0 0.0
          %1378 = vmatmul.mubr.f32.gmra.mrb[0].mxu0 %v1289
          %v1379 = vpop.f32.mrb[0].mxu0
          %v1380 = vadd.f32 %v1311, %v1379
          %v1381 = vpop.f32.mrb[0].mxu0
          %1382 = vdwg.mxu0
          %v1383 = vmax.f32 %v1380, 0.0
          %v1384 = vld [vmem:[#allocation9] sm:$0xff]
          %v1385 = vld [vmem:[#allocation9 + $0x8] sm:$0xff]
          %v1386 = vld [vmem:[#allocation9 + $0x10] sm:$0xff]
          %v1387 = vld [vmem:[#allocation9 + $0x18] sm:$0xff]
          %v1388 = vld [vmem:[#allocation9 + $0x20] sm:$0xff]
          %v1389 = vld [vmem:[#allocation9 + $0x28] sm:$0xff]
          %v1390 = vld [vmem:[#allocation9 + $0x30] sm:$0xff]
          %v1391 = vld [vmem:[#allocation9 + $0x38] sm:$0xff]
          %v1392 = vld [vmem:[#allocation11] sm:$0x1]
          %v1394 = vlaneseq
          %v1395 = vshrl.u32 %v1394, 7
          %v1396 = vsub.s32 0, %v1395
          %v1397 = vrot.slane %v1392, %v1396
          %vm1399 = vcmask 523264
          %v1401 = vsel %vm1399, %v1383, 0
          %1403 = vmatprep.subr.mxu0 0.0
          %1404 = vmatpush1.msra.mxu0 %v1384
          %1405 = vmatprep.subr.mxu0 0.0
          %1406 = vmatpush1.msra.mxu0 %v1385
          %1407 = vmatprep.subr.mxu0 0.0
          %1408 = vmatpush1.msra.mxu0 %v1386
          %1409 = vmatprep.subr.mxu0 0.0
          %1410 = vmatpush1.msra.mxu0 %v1387
          %1411 = vmatprep.subr.mxu0 0.0
          %1412 = vmatpush1.msra.mxu0 %v1388
          %1413 = vmatprep.subr.mxu0 0.0
          %1414 = vmatpush1.msra.mxu0 %v1389
          %1415 = vmatprep.subr.mxu0 0.0
          %1416 = vmatpush1.msra.mxu0 %v1390
          %1417 = vmatprep.subr.mxu0 0.0
          %1418 = vmatpush1.msra.mxu0 %v1391
          %1419 = vmatprep.subr.mxu0 0.0
          %1420 = vmatpush1.msra.mxu0 0.0
          %1421 = vmatprep.subr.mxu0 0.0
          %1422 = vmatpush1.msra.mxu0 0.0
          %1423 = vmatprep.subr.mxu0 0.0
          %1424 = vmatpush1.msra.mxu0 0.0
          %1425 = vmatprep.subr.mxu0 0.0
          %1426 = vmatpush1.msra.mxu0 0.0
          %1427 = vmatprep.subr.mxu0 0.0
          %1428 = vmatpush1.msra.mxu0 0.0
          %1429 = vmatprep.subr.mxu0 0.0
          %1430 = vmatpush1.msra.mxu0 0.0
          %1431 = vmatprep.subr.mxu0 0.0
          %1432 = vmatpush1.msra.mxu0 0.0
          %1433 = vmatprep.subr.mxu0 0.0
          %1434 = vmatpush1.msra.mxu0 0.0
          %1435 = vmatprep.subr.mxu0 0.0
          %1436 = vmatpush1.msra.mxu0 0.0
          %1437 = vmatprep.subr.mxu0 0.0
          %1438 = vmatpush1.msra.mxu0 0.0
          %1439 = vmatprep.subr.mxu0 0.0
          %1440 = vmatpush1.msra.mxu0 0.0
          %1441 = vmatprep.subr.mxu0 0.0
          %1442 = vmatpush1.msra.mxu0 0.0
          %1443 = vmatprep.subr.mxu0 0.0
          %1444 = vmatpush1.msra.mxu0 0.0
          %1445 = vmatprep.subr.mxu0 0.0
          %1446 = vmatpush1.msra.mxu0 0.0
          %1447 = vmatprep.subr.mxu0 0.0
          %1448 = vmatpush1.msra.mxu0 0.0
          %1449 = vmatprep.subr.mxu0 0.0
          %1450 = vmatpush1.msra.mxu0 0.0
          %1451 = vmatprep.subr.mxu0 0.0
          %1452 = vmatpush1.msra.mxu0 0.0
          %1453 = vmatprep.subr.mxu0 0.0
          %1454 = vmatpush1.msra.mxu0 0.0
          %1455 = vmatprep.subr.mxu0 0.0
          %1456 = vmatpush1.msra.mxu0 0.0
          %1457 = vmatprep.subr.mxu0 0.0
          %1458 = vmatpush1.msra.mxu0 0.0
          %1459 = vmatprep.subr.mxu0 0.0
          %1460 = vmatpush1.msra.mxu0 0.0
          %1461 = vmatprep.subr.mxu0 0.0
          %1462 = vmatpush1.msra.mxu0 0.0
          %1463 = vmatprep.subr.mxu0 0.0
          %1464 = vmatpush1.msra.mxu0 0.0
          %1465 = vmatprep.subr.mxu0 0.0
          %1466 = vmatpush1.msra.mxu0 0.0
          %1467 = vmatprep.mubr.f32.mxu0 0.0
          %1468 = vmatmul.mubr.f32.gmra.mrb[0].mxu0 %v1401
          %v1469 = vpop.f32.mrb[0].mxu0
          %v1470 = vadd.f32 %v1397, %v1469
          %v1471 = vpop.f32.mrb[0].mxu0
          %1472 = vdwg.mxu0
          %1473 = vst [vmem:[#allocation12] sm:$0x3] %v1470
        $region76: #{model_forward.1} parent=47 // pred_fallthru
          _
        // Predicated region
        $region77: #{model_forward.1} parent=47 // pred_check
          %p1474 = pneg %p194
        $region78: #{model_forward.1} parent=47 // pred_check_branch
          %1476 = sbr.rel (%p1474) target = $region80
        $region79: #{model_forward.1} parent=47 // pred_region
          %s1478 = ssub.s32 32, 32
          %1479 = vsyncadd [#allocation5], %s1478
          %s1481 = sshll.u32 [#allocation12], 4
          %s1482 = int_to_ptr.vmem [resolvable:$true] %s1481
          %1484 = dma.vmem_to_hbm [thread:$0]  %s1482, 32, %s7, [#allocation5]
        $region80: #{model_forward.1} parent=47 // pred_fallthru
          _
        // Predicated region
        $region81: #{model_forward.1} parent=47 // pred_check
          %p1485 = pneg %p194
        $region82: #{model_forward.1} parent=47 // pred_check_branch
          %1487 = sbr.rel (%p1485) target = $region84
        $region83: #{model_forward.1} parent=47 // pred_region
          %1488 = dma.done [#allocation5], 32
        $region84: #{model_forward.1} parent=47 // pred_fallthru
          _
      $region48: #{model_forward.1} parent=5 // pred_fallthru
        _
      %p1489 = scmp.le.s32.totalorder 2, %s19
      // Predicated region
      $region85: #{model_forward.1} parent=5 // pred_check
        %p1490 = pneg %p1489
      $region86: #{model_forward.1} parent=5 // pred_check_branch
        %1492 = sbr.rel (%p1490) target = $region88
      $region87: #{model_forward.1} parent=5 // pred_region
        %s1493 = ssub.s32 %s19, 2
      $region88: #{model_forward.1} parent=5 // pred_fallthru
        _
    $region6: #{model_forward.1} parent=1 // loop_footer
      %s23 = sadd.s32 1, %s19
    $region7: #{model_forward.1} parent=1 // loop_footer_branch
      %18 = sbr.rel target = $region3
    $region8: #{model_forward.1} parent=1 // loop_exit
      _
    %1494 = vsyncpa [#allocation4], 1
    %s1495 = scalar_lea.sflag [#allocation4], 1
    %1496 = vsyncpa %s1495, 1
    %1497 = vsyncpa [#allocation7], 1
    %1498 = vsyncpa [#allocation10], 1
    %1499 = vsyncpa [#allocation5], 1
    %s1500 = scalar_lea.sflag [#allocation5], 1
    %1501 = vsyncpa %s1500, 1

</llo_original>
